<compile_context>
chip_gen: v7x
topology: tpu7x:2x2x1
jax: 0.10.0
libtpu: 0.0.40
codegen_flags: <defaults>
</compile_context>

<pallas_src>
import functools
import math

import jax
import jax.numpy as jnp
from jax.experimental import pallas as pl
from jax.experimental.pallas import tpu as pltpu


def _bert_self_attn_kernel(x_ref, mask_ref, w_ref, b_ref,
                           ctx_ref, *probs_refs,
                           head_size, heads_per_step,
                           clamp_min_for_underflow, clamp_max_for_overflow):
    hd = head_size
    hg = heads_per_step
    g = pl.program_id(1)                           # head-group index

    x = x_ref[0]                                   # (S, H), compute dtype
    w = w_ref[g]                                   # (H, 3*hg*hd), VMEM-resident slab
    bias = b_ref[g]                                # (1, 3*hg*hd), f32
    mask = mask_ref[0, 0].astype(jnp.float32)      # (1, S), additive

    # Fused QKV projection for all hg heads of this group: one wide MXU
    # matmul with an f32 accumulator.  1/sqrt(hd) is folded into the Q
    # columns of w/bias on the host.
    qkv = jnp.dot(x, w, preferred_element_type=jnp.float32) + bias  # (S, 3*hg*hd)

    qw = hg * hd
    q_all = qkv[:, :qw].astype(x.dtype)            # (S, hg*hd)
    k_all = qkv[:, qw:2 * qw].astype(x.dtype)      # (S, hg*hd)
    v_all = qkv[:, 2 * qw:].astype(x.dtype)        # (S, hg*hd)

    ctx_parts = []
    for h in range(hg):                            # static, small (2/4/...)
        q = q_all[:, h * hd:(h + 1) * hd]
        k = k_all[:, h * hd:(h + 1) * hd]
        v = v_all[:, h * hd:(h + 1) * hd]

        # attention_scores = Q @ K^T for this head : (S, S), f32 accumulate.
        scores = jnp.einsum('qd,kd->qk', q, k,
                            preferred_element_type=jnp.float32)
        if clamp_min_for_underflow:
            scores = jnp.maximum(scores, -50000.0)
        if clamp_max_for_overflow:
            scores = jnp.minimum(scores, 50000.0)
        scores = scores + mask                     # broadcast over queries

        # Softmax over the key axis (f32; denominator via EUP approx recip).
        m = jnp.max(scores, axis=-1, keepdims=True)
        e = jnp.exp(scores - m)
        denom = jnp.sum(e, axis=-1, keepdims=True)
        probs = e * pl.reciprocal(denom, approx=True)   # (S, S) f32

        # Dropout is identity in eval mode.
        # TODO(synk): training-mode dropout (pltpu.prng_*) not implemented.

        ctx_parts.append(jnp.dot(probs.astype(v.dtype), v,
                                 preferred_element_type=jnp.float32))
        if probs_refs:
            probs_refs[0][0, h] = probs.astype(probs_refs[0].dtype)

    # Single lane-dense store of the whole head group: (S, hg*hd).
    ctx_ref[0] = jnp.concatenate(ctx_parts, axis=-1).astype(ctx_ref.dtype)


def _auto_heads_per_step(num_heads, hd):
    """Smallest head-group size giving lane-dense (multiple-of-128) context
    stores; among those prefer a fused-QKV width that is a multiple of 256
    (v6e/v7x MXU tile).  Falls back to all heads (block == full trailing dim,
    always layout-legal) when hd is tiny."""
    divisors = [d for d in range(1, num_heads + 1) if num_heads % d == 0]
    lane_ok = [d for d in divisors if (d * hd) % 128 == 0]
    if lane_ok:
        mxu256 = [d for d in lane_ok if (3 * d * hd) % 256 == 0]
        return mxu256[0] if mxu256 else lane_ok[0]
    return num_heads


def _vmem_estimate_bytes(S, H, ng, hg, hd, in_itemsize, out_itemsize,
                         probs_itemsize, output_attentions):
    n3 = 3 * hg * hd
    b = 2 * S * H * in_itemsize            # x (double-buffered)
    b += 2 * ng * H * n3 * in_itemsize     # resident weight slab (2 bufs worst case)
    b += 2 * ng * n3 * 4                   # bias slab
    b += 2 * S * hg * hd * out_itemsize    # ctx output block
    if output_attentions:
        b += 2 * hg * S * S * probs_itemsize
    b += (3 * S * S + S * n3) * 4          # f32 score/exp/prob intermediates + qkv
    return b


def bert_self_attention(hidden_states, attention_mask,
                        wq, bq, wk, bk, wv, bv,
                        *, num_heads,
                        clamp_min_for_underflow=False,
                        clamp_max_for_overflow=False,
                        output_attentions=False,
                        probs_dtype=jnp.float32,
                        heads_per_step=None,
                        compute_dtype=None):
    """hidden_states: [B, S, H]; attention_mask: [B, 1, 1, S] (additive) or None.
    Weights are [H, H] (already transposed, y = x @ W + b); biases [H].
    Returns (context_layer [B, S, H],) or
            (context_layer, attention_probs [B, nh, S, S]).

    compute_dtype=jnp.bfloat16 casts x / W to bf16 for the MXU (f32
    accumulation + f32 softmax kept) — the biggest FLOP-rate lever for f32
    models.  probs_dtype=jnp.bfloat16 halves the probs HBM writeback when
    output_attentions=True.  Note: the softmax uses an approximate reciprocal,
    so returned probability rows sum to 1 only to ~1e-3."""
    B, S, H = hidden_states.shape
    assert H % num_heads == 0
    hd = H // num_heads
    scale = 1.0 / math.sqrt(hd)

    if heads_per_step is None:
        heads_per_step = _auto_heads_per_step(num_heads, hd)
    hg = heads_per_step
    assert num_heads % hg == 0
    ng = num_heads // hg

    if compute_dtype is None:
        compute_dtype = hidden_states.dtype
    x = hidden_states.astype(compute_dtype)

    if attention_mask is None:
        attention_mask = jnp.zeros((B, 1, 1, S), dtype=jnp.float32)

    # Fold the score scale into Q's weight/bias; pack fused per-group QKV
    # weights as (ng, H, 3*hg*hd) — columns ordered [Q heads | K heads | V
    # heads], each head a contiguous hd-wide chunk so the kernel slices at
    # static offsets h*hd.
    def per_head(w):                                    # (H, H) -> (nh, H, hd)
        return jnp.transpose(w.reshape(H, num_heads, hd), (1, 0, 2))

    def grouped(w):                                     # (H, H) -> (ng, H, hg*hd)
        ph = per_head(w).reshape(ng, hg, H, hd)
        return jnp.transpose(ph, (0, 2, 1, 3)).reshape(ng, H, hg * hd)

    def grouped_bias(b):                                # (H,) -> (ng, 1, hg*hd)
        return b.reshape(ng, 1, hg * hd)

    w_slab = jnp.concatenate(
        [grouped(wq * scale), grouped(wk), grouped(wv)],
        axis=-1).astype(compute_dtype)                  # (ng, H, 3*hg*hd)
    b_slab = jnp.concatenate(
        [grouped_bias(bq * scale), grouped_bias(bk), grouped_bias(bv)],
        axis=-1).astype(jnp.float32)                    # (ng, 1, 3*hg*hd)

    kernel = functools.partial(
        _bert_self_attn_kernel,
        head_size=hd,
        heads_per_step=hg,
        clamp_min_for_underflow=clamp_min_for_underflow,
        clamp_max_for_overflow=clamp_max_for_overflow)

    out_shape = [jax.ShapeDtypeStruct((B, S, H), hidden_states.dtype)]
    out_specs = [pl.BlockSpec((1, S, hg * hd), lambda b, g: (b, 0, g))]
    if output_attentions:
        out_shape.append(
            jax.ShapeDtypeStruct((B, num_heads, S, S), probs_dtype))
        out_specs.append(
            pl.BlockSpec((1, hg, S, S), lambda b, g: (b, g, 0, 0)))

    in_itemsize = jnp.dtype(compute_dtype).itemsize
    out_itemsize = jnp.dtype(hidden_states.dtype).itemsize
    probs_itemsize = jnp.dtype(probs_dtype).itemsize
    est = _vmem_estimate_bytes(S, H, ng, hg, hd, in_itemsize, out_itemsize,
                               probs_itemsize, output_attentions)
    cp_kwargs = dict(dimension_semantics=("parallel", "parallel"))
    if est > 30 * 1024 * 1024:
        # Monolithic (S, S) tiles overflow the scoped-VMEM default for long S
        # with probs output enabled; raise the limit.  On v7x (64 MiB physical)
        # this only stretches so far — see the flash k-tiling TODO above.
        cp_kwargs["vmem_limit_bytes"] = min(int(est * 1.25), 128 * 1024 * 1024)

    outs = pl.pallas_call(
        kernel,
        out_shape=tuple(out_shape),
        grid_spec=pltpu.PrefetchScalarGridSpec(
            num_scalar_prefetch=0,
            grid=(B, ng),
            in_specs=[
                # x: constant over the inner head-group axis -> fetched once
                # per batch element, not per group.
                pl.BlockSpec((1, S, H), lambda b, g: (b, 0, 0)),
                pl.BlockSpec((1, 1, 1, S), lambda b, g: (b, 0, 0, 0)),
                # Weight/bias slabs: full-array blocks, CONSTANT index map ->
                # VMEM-resident, fetched from HBM once per call.
                pl.BlockSpec((ng, H, 3 * hg * hd), lambda b, g: (0, 0, 0)),
                pl.BlockSpec((ng, 1, 3 * hg * hd), lambda b, g: (0, 0, 0)),
            ],
            out_specs=tuple(out_specs),
        ),
        compiler_params=pltpu.CompilerParams(**cp_kwargs),
    )(x, attention_mask, w_slab, b_slab)

    if output_attentions:
        ctx, probs = outs
        return ctx, probs
    (ctx,) = outs
    return (ctx,)


def _reference(hidden_states, attention_mask, wq, bq, wk, bk, wv, bv, num_heads):
    B, S, H = hidden_states.shape
    hd = H // num_heads

    def proj(x, w, b):
        y = x @ w + b
        return y.reshape(B, S, num_heads, hd).transpose(0, 2, 1, 3)

    q = proj(hidden_states, wq, bq)
    k = proj(hidden_states, wk, bk)
    v = proj(hidden_states, wv, bv)
    scores = jnp.einsum('bhqd,bhkd->bhqk', q, k) / math.sqrt(hd)
    scores = scores + attention_mask
    probs = jax.nn.softmax(scores, axis=-1)
    ctx = jnp.einsum('bhqk,bhkd->bhqd', probs, v)
    ctx = ctx.transpose(0, 2, 1, 3).reshape(B, S, H)
    return ctx, probs


if __name__ == "__main__":
    B, S, H, NH = 2, 8, 32, 4

    key = jax.random.PRNGKey(0)
    ks = jax.random.split(key, 8)
    hidden_states = jax.random.normal(ks[0], (B, S, H), dtype=jnp.float32)
    # Additive mask: 0 for attended positions, -10000 for the last position of
    # batch element 1 (typical BERT-style extended attention mask).
    attention_mask = jnp.zeros((B, 1, 1, S), dtype=jnp.float32)
    attention_mask = attention_mask.at[1, 0, 0, -1].set(-10000.0)

    scale = 1.0 / math.sqrt(H)
    wq = jax.random.normal(ks[1], (H, H), dtype=jnp.float32) * scale
    wk = jax.random.normal(ks[2], (H, H), dtype=jnp.float32) * scale
    wv = jax.random.normal(ks[3], (H, H), dtype=jnp.float32) * scale
    bq = jax.random.normal(ks[4], (H,), dtype=jnp.float32) * 0.01
    bk = jax.random.normal(ks[5], (H,), dtype=jnp.float32) * 0.01
    bv = jax.random.normal(ks[6], (H,), dtype=jnp.float32) * 0.01

    ref_ctx, ref_probs = _reference(
        hidden_states, attention_mask, wq, bq, wk, bk, wv, bv, NH)

    # With attention probs returned (output_attentions=True, f32 probs).
    ctx, probs = bert_self_attention(
        hidden_states, attention_mask, wq, bq, wk, bk, wv, bv,
        num_heads=NH, output_attentions=True, probs_dtype=jnp.float32)
    jax.block_until_ready((ctx, probs))
    # Tolerances account for the EUP approx reciprocal in softmax.
    assert jnp.allclose(ctx, ref_ctx, atol=2e-3, rtol=2e-3)
    assert jnp.allclose(probs, ref_probs, atol=2e-3, rtol=2e-3)

    # Default path (output_attentions=False): no probs HBM writeback at all.
    (ctx_only,) = bert_self_attention(
        hidden_states, attention_mask, wq, bq, wk, bk, wv, bv,
        num_heads=NH, output_attentions=False)
    jax.block_until_ready(ctx_only)
    assert jnp.allclose(ctx_only, ref_ctx, atol=2e-3, rtol=2e-3)

    # bf16 compute path (f32 accumulation + f32 softmax): looser tolerance.
    (ctx_bf16,) = bert_self_attention(
        hidden_states, attention_mask, wq, bq, wk, bk, wv, bv,
        num_heads=NH, output_attentions=False, compute_dtype=jnp.bfloat16)
    jax.block_until_ready(ctx_bf16)
    assert jnp.allclose(ctx_bf16, ref_ctx, atol=3e-2, rtol=3e-2)

    print("KERNEL_OK")
</pallas_src>

<mosaic_0001>
module attributes {stable_mosaic.version = 11 : i64} {
  func.func @_bert_self_attn_kernel(%arg0: i32, %arg1: i32, %arg2: memref<1x8x32xf32, #tpu.memory_space<vmem>>, %arg3: memref<1x1x1x8xf32, #tpu.memory_space<vmem>>, %arg4: memref<1x32x96xf32, #tpu.memory_space<vmem>>, %arg5: memref<1x1x96xf32, #tpu.memory_space<vmem>>, %arg6: memref<1x8x32xf32, #tpu.memory_space<vmem>>, %arg7: memref<1x4x8x8xf32, #tpu.memory_space<vmem>>) attributes {dimension_semantics = [#tpu.dimension_semantics<parallel>, #tpu.dimension_semantics<parallel>], iteration_bounds = array<i64: 2, 1>, scalar_prefetch = 0 : i64, scratch_operands = 0 : i64, tpu.core_type = #tpu.core_type<tc>, window_params = [{transform_indices = @transform_0, window_bounds = array<i64: 1, 8, 32>}, {transform_indices = @transform_1, window_bounds = array<i64: 1, 1, 1, 8>}, {pipeline_mode = #tpu.pipeline_mode<synchronous>, transform_indices = @transform_2, window_bounds = array<i64: 1, 32, 96>}, {pipeline_mode = #tpu.pipeline_mode<synchronous>, transform_indices = @transform_3, window_bounds = array<i64: 1, 1, 96>}, {transform_indices = @transform_4, window_bounds = array<i64: 1, 8, 32>}, {transform_indices = @transform_5, window_bounds = array<i64: 1, 4, 8, 8>}]} {
    %c0 = arith.constant 0 : index
    %c0_0 = arith.constant 0 : index
    %c0_1 = arith.constant 0 : index
    %0 = vector.load %arg2[%c0, %c0_0, %c0_1] : memref<1x8x32xf32, #tpu.memory_space<vmem>>, vector<1x8x32xf32>
    %1 = vector.shape_cast %0 : vector<1x8x32xf32> to vector<8x32xf32>
    %2 = arith.index_cast %arg1 : i32 to index
    %c0_2 = arith.constant 0 : index
    %c0_3 = arith.constant 0 : index
    %3 = vector.load %arg4[%2, %c0_2, %c0_3] : memref<1x32x96xf32, #tpu.memory_space<vmem>>, vector<1x32x96xf32>
    %4 = vector.shape_cast %3 : vector<1x32x96xf32> to vector<32x96xf32>
    %5 = arith.index_cast %arg1 : i32 to index
    %c0_4 = arith.constant 0 : index
    %c0_5 = arith.constant 0 : index
    %6 = vector.load %arg5[%5, %c0_4, %c0_5] : memref<1x1x96xf32, #tpu.memory_space<vmem>>, vector<1x1x96xf32>
    %7 = vector.shape_cast %6 : vector<1x1x96xf32> to vector<1x96xf32>
    %c0_6 = arith.constant 0 : index
    %c0_7 = arith.constant 0 : index
    %c0_8 = arith.constant 0 : index
    %c0_9 = arith.constant 0 : index
    %8 = vector.load %arg3[%c0_6, %c0_7, %c0_8, %c0_9] : memref<1x1x1x8xf32, #tpu.memory_space<vmem>>, vector<1x1x1x8xf32>
    %9 = vector.shape_cast %8 : vector<1x1x1x8xf32> to vector<1x8xf32>
    %cst = arith.constant dense<0.000000e+00> : vector<8x96xf32>
    %10 = tpu.matmul %1, %4, %cst {dimension_numbers = #tpu.dot_dimension_numbers<[1], [0], [0], [1], [0, 0, 1, 1], [], []>} : vector<8x32xf32>, vector<32x96xf32>, vector<8x96xf32> -> vector<8x96xf32>
    %11 = vector.broadcast %7 : vector<1x96xf32> to vector<8x96xf32>
    %12 = arith.addf %10, %11 : vector<8x96xf32>
    %13 = vector.extract_strided_slice %12 {offsets = [0, 0], sizes = [8, 32], strides = [1, 1]} : vector<8x96xf32> to vector<8x32xf32>
    %14 = vector.extract_strided_slice %12 {offsets = [0, 32], sizes = [8, 32], strides = [1, 1]} : vector<8x96xf32> to vector<8x32xf32>
    %15 = vector.extract_strided_slice %12 {offsets = [0, 64], sizes = [8, 32], strides = [1, 1]} : vector<8x96xf32> to vector<8x32xf32>
    %16 = vector.extract_strided_slice %13 {offsets = [0, 0], sizes = [8, 8], strides = [1, 1]} : vector<8x32xf32> to vector<8x8xf32>
    %17 = vector.extract_strided_slice %14 {offsets = [0, 0], sizes = [8, 8], strides = [1, 1]} : vector<8x32xf32> to vector<8x8xf32>
    %18 = vector.extract_strided_slice %15 {offsets = [0, 0], sizes = [8, 8], strides = [1, 1]} : vector<8x32xf32> to vector<8x8xf32>
    "tpu.trace_start"() <{level = 10 : i32, message = "qd,kd->qk"}> : () -> ()
    %cst_10 = arith.constant dense<0.000000e+00> : vector<8x8xf32>
    %19 = tpu.matmul %16, %17, %cst_10 {dimension_numbers = #tpu.dot_dimension_numbers<[1], [1], [0], [0], [0, 0, 1, 0], [], []>} : vector<8x8xf32>, vector<8x8xf32>, vector<8x8xf32> -> vector<8x8xf32>
    "tpu.trace_stop"() : () -> ()
    %20 = vector.broadcast %9 : vector<1x8xf32> to vector<8x8xf32>
    %21 = arith.addf %19, %20 : vector<8x8xf32>
    %cst_11 = arith.constant dense<0xFF800000> : vector<8xf32>
    %22 = vector.multi_reduction <maximumf>, %21, %cst_11 [1] : vector<8x8xf32> to vector<8xf32>
    %23 = vector.shape_cast %22 : vector<8xf32> to vector<8x1xf32>
    %24 = vector.broadcast %23 : vector<8x1xf32> to vector<8x8xf32>
    %25 = arith.subf %21, %24 : vector<8x8xf32>
    %26 = math.exp %25 : vector<8x8xf32>
    %cst_12 = arith.constant dense<0.000000e+00> : vector<8xf32>
    %27 = vector.multi_reduction <add>, %26, %cst_12 [1] : vector<8x8xf32> to vector<8xf32>
    %28 = vector.shape_cast %27 : vector<8xf32> to vector<8x1xf32>
    %29 = tpu.reciprocal %28 {approx = true} : vector<8x1xf32> -> vector<8x1xf32>
    %30 = vector.broadcast %29 : vector<8x1xf32> to vector<8x8xf32>
    %31 = arith.mulf %26, %30 : vector<8x8xf32>
    %cst_13 = arith.constant dense<0.000000e+00> : vector<8x8xf32>
    %32 = tpu.matmul %31, %18, %cst_13 {dimension_numbers = #tpu.dot_dimension_numbers<[1], [0], [0], [1], [0, 0, 1, 1], [], []>} : vector<8x8xf32>, vector<8x8xf32>, vector<8x8xf32> -> vector<8x8xf32>
    %c0_14 = arith.constant 0 : index
    %c0_15 = arith.constant 0 : index
    %c0_16 = arith.constant 0 : index
    %c0_17 = arith.constant 0 : index
    %33 = vector.load %arg7[%c0_14, %c0_15, %c0_16, %c0_17] : memref<1x4x8x8xf32, #tpu.memory_space<vmem>>, vector<1x1x8x8xf32>
    %34 = vector.shape_cast %33 : vector<1x1x8x8xf32> to vector<8x8xf32>
    %35 = vector.shape_cast %31 : vector<8x8xf32> to vector<1x1x8x8xf32>
    tpu.vector_store %arg7[%c0_14, %c0_15, %c0_16, %c0_17], %35 {strides = array<i32>} : memref<1x4x8x8xf32, #tpu.memory_space<vmem>>, vector<1x1x8x8xf32>,
    %36 = vector.extract_strided_slice %13 {offsets = [0, 8], sizes = [8, 8], strides = [1, 1]} : vector<8x32xf32> to vector<8x8xf32>
    %37 = vector.extract_strided_slice %14 {offsets = [0, 8], sizes = [8, 8], strides = [1, 1]} : vector<8x32xf32> to vector<8x8xf32>
    %38 = vector.extract_strided_slice %15 {offsets = [0, 8], sizes = [8, 8], strides = [1, 1]} : vector<8x32xf32> to vector<8x8xf32>
    "tpu.trace_start"() <{level = 10 : i32, message = "qd,kd->qk"}> : () -> ()
    %cst_18 = arith.constant dense<0.000000e+00> : vector<8x8xf32>
    %39 = tpu.matmul %36, %37, %cst_18 {dimension_numbers = #tpu.dot_dimension_numbers<[1], [1], [0], [0], [0, 0, 1, 0], [], []>} : vector<8x8xf32>, vector<8x8xf32>, vector<8x8xf32> -> vector<8x8xf32>
    "tpu.trace_stop"() : () -> ()
    %40 = vector.broadcast %9 : vector<1x8xf32> to vector<8x8xf32>
    %41 = arith.addf %39, %40 : vector<8x8xf32>
    %cst_19 = arith.constant dense<0xFF800000> : vector<8xf32>
    %42 = vector.multi_reduction <maximumf>, %41, %cst_19 [1] : vector<8x8xf32> to vector<8xf32>
    %43 = vector.shape_cast %42 : vector<8xf32> to vector<8x1xf32>
    %44 = vector.broadcast %43 : vector<8x1xf32> to vector<8x8xf32>
    %45 = arith.subf %41, %44 : vector<8x8xf32>
    %46 = math.exp %45 : vector<8x8xf32>
    %cst_20 = arith.constant dense<0.000000e+00> : vector<8xf32>
    %47 = vector.multi_reduction <add>, %46, %cst_20 [1] : vector<8x8xf32> to vector<8xf32>
    %48 = vector.shape_cast %47 : vector<8xf32> to vector<8x1xf32>
    %49 = tpu.reciprocal %48 {approx = true} : vector<8x1xf32> -> vector<8x1xf32>
    %50 = vector.broadcast %49 : vector<8x1xf32> to vector<8x8xf32>
    %51 = arith.mulf %46, %50 : vector<8x8xf32>
    %cst_21 = arith.constant dense<0.000000e+00> : vector<8x8xf32>
    %52 = tpu.matmul %51, %38, %cst_21 {dimension_numbers = #tpu.dot_dimension_numbers<[1], [0], [0], [1], [0, 0, 1, 1], [], []>} : vector<8x8xf32>, vector<8x8xf32>, vector<8x8xf32> -> vector<8x8xf32>
    %c0_22 = arith.constant 0 : index
    %c1 = arith.constant 1 : index
    %c0_23 = arith.constant 0 : index
    %c0_24 = arith.constant 0 : index
    %53 = vector.load %arg7[%c0_22, %c1, %c0_23, %c0_24] : memref<1x4x8x8xf32, #tpu.memory_space<vmem>>, vector<1x1x8x8xf32>
    %54 = vector.shape_cast %53 : vector<1x1x8x8xf32> to vector<8x8xf32>
    %55 = vector.shape_cast %51 : vector<8x8xf32> to vector<1x1x8x8xf32>
    tpu.vector_store %arg7[%c0_22, %c1, %c0_23, %c0_24], %55 {strides = array<i32>} : memref<1x4x8x8xf32, #tpu.memory_space<vmem>>, vector<1x1x8x8xf32>,
    %56 = vector.extract_strided_slice %13 {offsets = [0, 16], sizes = [8, 8], strides = [1, 1]} : vector<8x32xf32> to vector<8x8xf32>
    %57 = vector.extract_strided_slice %14 {offsets = [0, 16], sizes = [8, 8], strides = [1, 1]} : vector<8x32xf32> to vector<8x8xf32>
    %58 = vector.extract_strided_slice %15 {offsets = [0, 16], sizes = [8, 8], strides = [1, 1]} : vector<8x32xf32> to vector<8x8xf32>
    "tpu.trace_start"() <{level = 10 : i32, message = "qd,kd->qk"}> : () -> ()
    %cst_25 = arith.constant dense<0.000000e+00> : vector<8x8xf32>
    %59 = tpu.matmul %56, %57, %cst_25 {dimension_numbers = #tpu.dot_dimension_numbers<[1], [1], [0], [0], [0, 0, 1, 0], [], []>} : vector<8x8xf32>, vector<8x8xf32>, vector<8x8xf32> -> vector<8x8xf32>
    "tpu.trace_stop"() : () -> ()
    %60 = vector.broadcast %9 : vector<1x8xf32> to vector<8x8xf32>
    %61 = arith.addf %59, %60 : vector<8x8xf32>
    %cst_26 = arith.constant dense<0xFF800000> : vector<8xf32>
    %62 = vector.multi_reduction <maximumf>, %61, %cst_26 [1] : vector<8x8xf32> to vector<8xf32>
    %63 = vector.shape_cast %62 : vector<8xf32> to vector<8x1xf32>
    %64 = vector.broadcast %63 : vector<8x1xf32> to vector<8x8xf32>
    %65 = arith.subf %61, %64 : vector<8x8xf32>
    %66 = math.exp %65 : vector<8x8xf32>
    %cst_27 = arith.constant dense<0.000000e+00> : vector<8xf32>
    %67 = vector.multi_reduction <add>, %66, %cst_27 [1] : vector<8x8xf32> to vector<8xf32>
    %68 = vector.shape_cast %67 : vector<8xf32> to vector<8x1xf32>
    %69 = tpu.reciprocal %68 {approx = true} : vector<8x1xf32> -> vector<8x1xf32>
    %70 = vector.broadcast %69 : vector<8x1xf32> to vector<8x8xf32>
    %71 = arith.mulf %66, %70 : vector<8x8xf32>
    %cst_28 = arith.constant dense<0.000000e+00> : vector<8x8xf32>
    %72 = tpu.matmul %71, %58, %cst_28 {dimension_numbers = #tpu.dot_dimension_numbers<[1], [0], [0], [1], [0, 0, 1, 1], [], []>} : vector<8x8xf32>, vector<8x8xf32>, vector<8x8xf32> -> vector<8x8xf32>
    %c0_29 = arith.constant 0 : index
    %c2 = arith.constant 2 : index
    %c0_30 = arith.constant 0 : index
    %c0_31 = arith.constant 0 : index
    %73 = vector.load %arg7[%c0_29, %c2, %c0_30, %c0_31] : memref<1x4x8x8xf32, #tpu.memory_space<vmem>>, vector<1x1x8x8xf32>
    %74 = vector.shape_cast %73 : vector<1x1x8x8xf32> to vector<8x8xf32>
    %75 = vector.shape_cast %71 : vector<8x8xf32> to vector<1x1x8x8xf32>
    tpu.vector_store %arg7[%c0_29, %c2, %c0_30, %c0_31], %75 {strides = array<i32>} : memref<1x4x8x8xf32, #tpu.memory_space<vmem>>, vector<1x1x8x8xf32>,
    %76 = vector.extract_strided_slice %13 {offsets = [0, 24], sizes = [8, 8], strides = [1, 1]} : vector<8x32xf32> to vector<8x8xf32>
    %77 = vector.extract_strided_slice %14 {offsets = [0, 24], sizes = [8, 8], strides = [1, 1]} : vector<8x32xf32> to vector<8x8xf32>
    %78 = vector.extract_strided_slice %15 {offsets = [0, 24], sizes = [8, 8], strides = [1, 1]} : vector<8x32xf32> to vector<8x8xf32>
    "tpu.trace_start"() <{level = 10 : i32, message = "qd,kd->qk"}> : () -> ()
    %cst_32 = arith.constant dense<0.000000e+00> : vector<8x8xf32>
    %79 = tpu.matmul %76, %77, %cst_32 {dimension_numbers = #tpu.dot_dimension_numbers<[1], [1], [0], [0], [0, 0, 1, 0], [], []>} : vector<8x8xf32>, vector<8x8xf32>, vector<8x8xf32> -> vector<8x8xf32>
    "tpu.trace_stop"() : () -> ()
    %80 = vector.broadcast %9 : vector<1x8xf32> to vector<8x8xf32>
    %81 = arith.addf %79, %80 : vector<8x8xf32>
    %cst_33 = arith.constant dense<0xFF800000> : vector<8xf32>
    %82 = vector.multi_reduction <maximumf>, %81, %cst_33 [1] : vector<8x8xf32> to vector<8xf32>
    %83 = vector.shape_cast %82 : vector<8xf32> to vector<8x1xf32>
    %84 = vector.broadcast %83 : vector<8x1xf32> to vector<8x8xf32>
    %85 = arith.subf %81, %84 : vector<8x8xf32>
    %86 = math.exp %85 : vector<8x8xf32>
    %cst_34 = arith.constant dense<0.000000e+00> : vector<8xf32>
    %87 = vector.multi_reduction <add>, %86, %cst_34 [1] : vector<8x8xf32> to vector<8xf32>
    %88 = vector.shape_cast %87 : vector<8xf32> to vector<8x1xf32>
    %89 = tpu.reciprocal %88 {approx = true} : vector<8x1xf32> -> vector<8x1xf32>
    %90 = vector.broadcast %89 : vector<8x1xf32> to vector<8x8xf32>
    %91 = arith.mulf %86, %90 : vector<8x8xf32>
    %cst_35 = arith.constant dense<0.000000e+00> : vector<8x8xf32>
    %92 = tpu.matmul %91, %78, %cst_35 {dimension_numbers = #tpu.dot_dimension_numbers<[1], [0], [0], [1], [0, 0, 1, 1], [], []>} : vector<8x8xf32>, vector<8x8xf32>, vector<8x8xf32> -> vector<8x8xf32>
    %c0_36 = arith.constant 0 : index
    %c3 = arith.constant 3 : index
    %c0_37 = arith.constant 0 : index
    %c0_38 = arith.constant 0 : index
    %93 = vector.load %arg7[%c0_36, %c3, %c0_37, %c0_38] : memref<1x4x8x8xf32, #tpu.memory_space<vmem>>, vector<1x1x8x8xf32>
    %94 = vector.shape_cast %93 : vector<1x1x8x8xf32> to vector<8x8xf32>
    %95 = vector.shape_cast %91 : vector<8x8xf32> to vector<1x1x8x8xf32>
    tpu.vector_store %arg7[%c0_36, %c3, %c0_37, %c0_38], %95 {strides = array<i32>} : memref<1x4x8x8xf32, #tpu.memory_space<vmem>>, vector<1x1x8x8xf32>,
    %96 = tpu.concatenate %32, %52, %72, %92 in 1 : vector<8x8xf32>, vector<8x8xf32>, vector<8x8xf32>, vector<8x8xf32> -> vector<8x32xf32>
    %c0_39 = arith.constant 0 : index
    %c0_40 = arith.constant 0 : index
    %c0_41 = arith.constant 0 : index
    %97 = vector.load %arg6[%c0_39, %c0_40, %c0_41] : memref<1x8x32xf32, #tpu.memory_space<vmem>>, vector<1x8x32xf32>
    %98 = vector.shape_cast %97 : vector<1x8x32xf32> to vector<8x32xf32>
    %99 = vector.shape_cast %96 : vector<8x32xf32> to vector<1x8x32xf32>
    tpu.vector_store %arg6[%c0_39, %c0_40, %c0_41], %99 {strides = array<i32>} : memref<1x8x32xf32, #tpu.memory_space<vmem>>, vector<1x8x32xf32>,
    return
  }
  func.func @transform_0(%arg0: i32, %arg1: i32) -> (i32, i32, i32) {
    %c0_i32 = arith.constant 0 : i32
    %c0_i32_0 = arith.constant 0 : i32
    %c0_i32_1 = arith.constant 0 : i32
    return %arg0, %c0_i32, %c0_i32_0 : i32, i32, i32
  }
  func.func @transform_1(%arg0: i32, %arg1: i32) -> (i32, i32, i32, i32) {
    %c0_i32 = arith.constant 0 : i32
    %c0_i32_0 = arith.constant 0 : i32
    %c0_i32_1 = arith.constant 0 : i32
    %c0_i32_2 = arith.constant 0 : i32
    return %arg0, %c0_i32, %c0_i32_0, %c0_i32_1 : i32, i32, i32, i32
  }
  func.func @transform_2(%arg0: i32, %arg1: i32) -> (i32, i32, i32) {
    %c0_i32 = arith.constant 0 : i32
    %c0_i32_0 = arith.constant 0 : i32
    %c0_i32_1 = arith.constant 0 : i32
    %c0_i32_2 = arith.constant 0 : i32
    return %c0_i32, %c0_i32_0, %c0_i32_1 : i32, i32, i32
  }
  func.func @transform_3(%arg0: i32, %arg1: i32) -> (i32, i32, i32) {
    %c0_i32 = arith.constant 0 : i32
    %c0_i32_0 = arith.constant 0 : i32
    %c0_i32_1 = arith.constant 0 : i32
    %c0_i32_2 = arith.constant 0 : i32
    return %c0_i32, %c0_i32_0, %c0_i32_1 : i32, i32, i32
  }
  func.func @transform_4(%arg0: i32, %arg1: i32) -> (i32, i32, i32) {
    %c0_i32 = arith.constant 0 : i32
    %c0_i32_0 = arith.constant 0 : i32
    return %arg0, %c0_i32, %arg1 : i32, i32, i32
  }
  func.func @transform_5(%arg0: i32, %arg1: i32) -> (i32, i32, i32, i32) {
    %c0_i32 = arith.constant 0 : i32
    %c0_i32_0 = arith.constant 0 : i32
    %c0_i32_1 = arith.constant 0 : i32
    return %arg0, %arg1, %c0_i32, %c0_i32_0 : i32, i32, i32, i32
  }
}

</mosaic_0001>

<llo_original>
// kernel: tpu_custom_call.1
$region0: #{tpu_custom_call.1}
  #allocation0 [shape = 'u32[]', space=smem, size = 0x4, offset = 0x4, fixed_abs, tag = 'smem constant byte address 0x4 - core index']
  #allocation1 [shape = 'u32[144,128]{1,0:T(1,128)}', space=vmem, size = 0x12000, scoped, tag = 'internal scratch']
  %s0 = inlined_call_operand.hbm [shape: f32[2,8,32], index: 0, kind: input, shape index: {}]
  %s1 = inlined_call_operand.vmem [shape: f32[2,1,1,8], index: 1, kind: input, shape index: {}]
  %s2 = inlined_call_operand.hbm [shape: f32[1,32,96], index: 2, kind: input, shape index: {}]
  %s3 = inlined_call_operand.vmem [shape: f32[1,1,96], index: 3, kind: input, shape index: {}]
  %s4 = inlined_call_operand.hbm [shape: f32[2,8,32], index: 4, kind: output, shape index: {0}]
  %s5 = inlined_call_operand.hbm [shape: f32[2,4,8,8], index: 5, kind: output, shape index: {1}]
  %6 = xla_tuple %s4, %s5
  %s7 = sld [smem:[#allocation0]]
  $region65: #{tpu_custom_call.1} parent=0
    _
  %s9 = ssub.s32 1, %s7
  %s10 = scalar_select 0, %s9, %s7
  $region1: #{tpu_custom_call.1} parent=0
    #allocation2 [shape = 'u8[8192]{0}', space=vmem, size = 0x2000, scoped, tag = 'input window, operand 0']
    #allocation3 [shape = 's32[2]{0}', space=sflag, size = 0x8, scoped, tag = 'scoped memory for tpu_custom_call.1']
    #allocation4 [shape = 's32[2]{0}', space=sflag, size = 0x8, scoped, tag = 'scoped memory for tpu_custom_call.1']
    #allocation5 [shape = 'u8[16384]{0}', space=vmem, size = 0x4000, scoped, tag = 'input window, operand 2, single buffered']
    #allocation6 [shape = 's32[1]{0}', space=sflag, size = 0x4, scoped, tag = 'scoped memory for tpu_custom_call.1']
    #allocation7 [shape = 'u8[8192]{0}', space=vmem, size = 0x2000, scoped, tag = 'output window, operand 0']
    #allocation8 [shape = 'u8[32768]{0}', space=vmem, size = 0x8000, scoped, tag = 'output window, operand 1']
    #allocation9 [shape = 's32[2]{0}', space=sflag, size = 0x8, scoped, tag = 'scoped memory for tpu_custom_call.1']
    %11 = vsyncpa [#allocation3], 0
    %s12 = scalar_lea.sflag [#allocation3], 1
    %13 = vsyncpa %s12, 0
    %14 = vsyncpa [#allocation6], 0
    %15 = vsyncpa [#allocation4], 0
    %s16 = scalar_lea.sflag [#allocation4], 1
    %17 = vsyncpa %s16, 0
    %18 = vsyncpa [#allocation9], 0
    %s19 = scalar_lea.sflag [#allocation9], 1
    %20 = vsyncpa %s19, 0
    loop: start=0, step=1, limit=4
    $region2: #{tpu_custom_call.1} parent=1 // loop_pre_header
      _
    $region3: #{tpu_custom_call.1} parent=1 // loop_header
      %s22 = sphi 0, %s26
      %p23 = scmp.ge.s32.totalorder %s22, 4
      %s29 = sphi 0, %s41
      %s30 = sphi 0, %s37
      %s31 = sphi 0, %s29
      %s32 = sphi 0, %s30
      %s33 = sphi 0, %s31
      %s34 = sphi 0, %s32
      %s44 = sphi 0, %s46
      %s47 = sphi 0, %s44
      %s48 = sphi 0, %s47
      %s64 = sphi 0, %s48
      %s70 = sphi 0, %s72
      %s73 = sphi 0, %s70
      %s74 = sphi 0, %s73
      %s90 = sphi 0, %s74
      %s94 = sphi 0, %s94
      %s96 = sphi 0, %s94
      %s97 = sphi 0, %s96
      %s111 = sphi 0, %s97
      %s115 = sphi 0, %s115
      %s117 = sphi 0, %s115
      %s118 = sphi 0, %s117
      %s132 = sphi 0, %s118
      %s140 = sphi 0, %s142
      %s143 = sphi 0, %s140
      %s144 = sphi 0, %s143
      %s160 = sphi 0, %s144
      %s168 = sphi 0, %s170
      %s171 = sphi 0, %s168
      %s172 = sphi 0, %s171
      %s188 = sphi 0, %s172
    $region4: #{tpu_custom_call.1} parent=1 // loop_header_branch
      %25 = sbr.rel (%p23) target = $region8
    $region5: #{tpu_custom_call.1} parent=1 // loop_body
      %s27 = ssub.s32 %s22, 1
      %s28 = ssub.s32 %s22, 2
      %s35 = sadd.s32 1, %s30
      %p36 = scmp.ge.s32.totalorder %s35, 1
      %s37 = scalar_select %p36, 0, %s35
      %s38 = sadd.s32 1, %s29
      %s39 = scalar_select %p36, %s38, %s29
      %p40 = scmp.ge.s32.totalorder %s39, 2
      %s41 = scalar_select %p40, 0, %s39
      %s42 = ssub.s32 %s29, %s41
      %p43 = scmp.eq.s32.totalorder %s42, 0
      %s45 = sadd.s32 %s44, 1
      %s46 = scalar_select %p43, %s44, %s45
      %p49 = pneg %p43
      %p50 = scmp.eq.s32.totalorder %s22, 1
      %p51 = por %p49, %p50
      %p52 = scmp.ne.s32.totalorder %s44, %s47
      %p53 = scmp.eq.s32.totalorder %s22, 0
      %p54 = por %p52, %p53
      %p55 = scmp.ne.s32.totalorder %s44, %s47
      %p56 = scmp.eq.s32.totalorder %s27, 1
      %p57 = por %p55, %p56
      %p58 = scmp.ne.s32.totalorder %s47, %s48
      %p59 = scmp.eq.s32.totalorder %s27, 0
      %p60 = por %p58, %p59
      %p61 = scmp.ne.s32.totalorder %s47, %s48
      %p62 = scmp.eq.s32.totalorder %s28, 1
      %p63 = por %p61, %p62
      %p65 = scmp.ne.s32.totalorder %s48, %s64
      %p66 = scmp.eq.s32.totalorder %s28, 0
      %p67 = por %p65, %p66
      %s68 = ssub.s32 %s29, %s41
      %p69 = scmp.eq.s32.totalorder %s68, 0
      %s71 = sadd.s32 %s70, 1
      %s72 = scalar_select %p69, %s70, %s71
      %p75 = pneg %p69
      %p76 = scmp.eq.s32.totalorder %s22, 1
      %p77 = por %p75, %p76
      %p78 = scmp.ne.s32.totalorder %s70, %s73
      %p79 = scmp.eq.s32.totalorder %s22, 0
      %p80 = por %p78, %p79
      %p81 = scmp.ne.s32.totalorder %s70, %s73
      %p82 = scmp.eq.s32.totalorder %s27, 1
      %p83 = por %p81, %p82
      %p84 = scmp.ne.s32.totalorder %s73, %s74
      %p85 = scmp.eq.s32.totalorder %s27, 0
      %p86 = por %p84, %p85
      %p87 = scmp.ne.s32.totalorder %s73, %s74
      %p88 = scmp.eq.s32.totalorder %s28, 1
      %p89 = por %p87, %p88
      %p91 = scmp.ne.s32.totalorder %s74, %s90
      %p92 = scmp.eq.s32.totalorder %s28, 0
      %p93 = por %p91, %p92
      %s95 = sadd.s32 %s94, 1
      %p98 = scmp.eq.s32.totalorder %s22, 1
      %p99 = scmp.ne.s32.totalorder %s94, %s96
      %p100 = scmp.eq.s32.totalorder %s22, 0
      %p101 = por %p99, %p100
      %p102 = scmp.ne.s32.totalorder %s94, %s96
      %p103 = scmp.eq.s32.totalorder %s27, 1
      %p104 = por %p102, %p103
      %p105 = scmp.ne.s32.totalorder %s96, %s97
      %p106 = scmp.eq.s32.totalorder %s27, 0
      %p107 = por %p105, %p106
      %p108 = scmp.ne.s32.totalorder %s96, %s97
      %p109 = scmp.eq.s32.totalorder %s28, 1
      %p110 = por %p108, %p109
      %p112 = scmp.ne.s32.totalorder %s97, %s111
      %p113 = scmp.eq.s32.totalorder %s28, 0
      %p114 = por %p112, %p113
      %s116 = sadd.s32 %s115, 1
      %p119 = scmp.eq.s32.totalorder %s22, 1
      %p120 = scmp.ne.s32.totalorder %s115, %s117
      %p121 = scmp.eq.s32.totalorder %s22, 0
      %p122 = por %p120, %p121
      %p123 = scmp.ne.s32.totalorder %s115, %s117
      %p124 = scmp.eq.s32.totalorder %s27, 1
      %p125 = por %p123, %p124
      %p126 = scmp.ne.s32.totalorder %s117, %s118
      %p127 = scmp.eq.s32.totalorder %s27, 0
      %p128 = por %p126, %p127
      %p129 = scmp.ne.s32.totalorder %s117, %s118
      %p130 = scmp.eq.s32.totalorder %s28, 1
      %p131 = por %p129, %p130
      %p133 = scmp.ne.s32.totalorder %s118, %s132
      %p134 = scmp.eq.s32.totalorder %s28, 0
      %p135 = por %p133, %p134
      %s136 = ssub.s32 %s29, %s41
      %s137 = ssub.s32 %s30, %s37
      %s138 = sor.u32 %s136, %s137
      %p139 = scmp.eq.s32.totalorder %s138, 0
      %s141 = sadd.s32 %s140, 1
      %s142 = scalar_select %p139, %s140, %s141
      %p145 = pneg %p139
      %p146 = scmp.eq.s32.totalorder %s22, 1
      %p147 = por %p145, %p146
      %p148 = scmp.ne.s32.totalorder %s140, %s143
      %p149 = scmp.eq.s32.totalorder %s22, 0
      %p150 = por %p148, %p149
      %p151 = scmp.ne.s32.totalorder %s140, %s143
      %p152 = scmp.eq.s32.totalorder %s27, 1
      %p153 = por %p151, %p152
      %p154 = scmp.ne.s32.totalorder %s143, %s144
      %p155 = scmp.eq.s32.totalorder %s27, 0
      %p156 = por %p154, %p155
      %p157 = scmp.ne.s32.totalorder %s143, %s144
      %p158 = scmp.eq.s32.totalorder %s28, 1
      %p159 = por %p157, %p158
      %p161 = scmp.ne.s32.totalorder %s144, %s160
      %p162 = scmp.eq.s32.totalorder %s28, 0
      %p163 = por %p161, %p162
      %s164 = ssub.s32 %s29, %s41
      %s165 = ssub.s32 %s30, %s37
      %s166 = sor.u32 %s164, %s165
      %p167 = scmp.eq.s32.totalorder %s166, 0
      %s169 = sadd.s32 %s168, 1
      %s170 = scalar_select %p167, %s168, %s169
      %p173 = pneg %p167
      %p174 = scmp.eq.s32.totalorder %s22, 1
      %p175 = por %p173, %p174
      %p176 = scmp.ne.s32.totalorder %s168, %s171
      %p177 = scmp.eq.s32.totalorder %s22, 0
      %p178 = por %p176, %p177
      %p179 = scmp.ne.s32.totalorder %s168, %s171
      %p180 = scmp.eq.s32.totalorder %s27, 1
      %p181 = por %p179, %p180
      %p182 = scmp.ne.s32.totalorder %s171, %s172
      %p183 = scmp.eq.s32.totalorder %s27, 0
      %p184 = por %p182, %p183
      %p185 = scmp.ne.s32.totalorder %s171, %s172
      %p186 = scmp.eq.s32.totalorder %s28, 1
      %p187 = por %p185, %p186
      %p189 = scmp.ne.s32.totalorder %s172, %s188
      %p190 = scmp.eq.s32.totalorder %s28, 0
      %p191 = por %p189, %p190
      %p192 = scmp.le.s32.totalorder 1, %s22
      %p193 = scmp.lt.s32.totalorder %s22, 3
      %p194 = pnand %p192, %p193
      %p195 = pneg %p194
      // Predicated region
      $region9: #{tpu_custom_call.1} parent=5 // pred_check
        _
      $region10: #{tpu_custom_call.1} parent=5 // pred_check_branch
        %197 = sbr.rel (%p194) target = $region12
      $region11: #{tpu_custom_call.1} parent=5 // pred_region
        %s198 = ssub.s32 %s22, 1
        // Predicated region
        $region13: #{tpu_custom_call.1} parent=11 // pred_check
          %p199 = pneg %p107
        $region14: #{tpu_custom_call.1} parent=11 // pred_check_branch
          %201 = sbr.rel (%p199) target = $region16
        $region15: #{tpu_custom_call.1} parent=11 // pred_region
          %s203 = ssub.s32 512, 512
          %204 = vsyncadd [#allocation6], %s203
          %s205 = sshll.u32 [#allocation5], 4
          %s206 = int_to_ptr.vmem [resolvable:$true] %s205
          %211 = dma.hbm_to_vmem [thread:$0]  %s2, 512, %s206, [#allocation6], 128, 128, 8
        $region16: #{tpu_custom_call.1} parent=11 // pred_fallthru
          _
        // Predicated region
        $region17: #{tpu_custom_call.1} parent=11 // pred_check
          %p212 = pneg %p128
        $region18: #{tpu_custom_call.1} parent=11 // pred_check_branch
          %214 = sbr.rel (%p212) target = $region20
        $region19: #{tpu_custom_call.1} parent=11 // pred_region
          _
        $region20: #{tpu_custom_call.1} parent=11 // pred_fallthru
          _
      $region12: #{tpu_custom_call.1} parent=5 // pred_fallthru
        _
      %p215 = scmp.lt.s32.totalorder %s22, 2
      // Predicated region
      $region21: #{tpu_custom_call.1} parent=5 // pred_check
        %p216 = pneg %p215
      $region22: #{tpu_custom_call.1} parent=5 // pred_check_branch
        %218 = sbr.rel (%p216) target = $region24
      $region23: #{tpu_custom_call.1} parent=5 // pred_region
        // Predicated region
        $region25: #{tpu_custom_call.1} parent=23 // pred_check
          %p219 = pneg %p54
        $region26: #{tpu_custom_call.1} parent=23 // pred_check_branch
          %221 = sbr.rel (%p219) target = $region28
        $region27: #{tpu_custom_call.1} parent=23 // pred_region
          %s222 = sand.u32 %s44, 1
          %s223 = scalar_lea.sflag [#allocation3], %s222
          %s224 = sand.u32 %s44, 1
          %s225 = smul.addr %s224, 8
          %s226 = scalar_lea.vmem [#allocation2], %s225
          %s228 = ssub.s32 128, 128
          %229 = vsyncadd %s223, %s228
          %s230 = smul.addr %s29, 128
          %s231 = scalar_lea.hbm %s0, %s230
          %s233 = sshll.u32 %s226, 4
          %s234 = int_to_ptr.vmem [resolvable:$true] %s233
          %236 = dma.hbm_to_vmem [thread:$0]  %s231, 128, %s234, %s223
        $region28: #{tpu_custom_call.1} parent=23 // pred_fallthru
          _
        // Predicated region
        $region29: #{tpu_custom_call.1} parent=23 // pred_check
          %p237 = pneg %p80
        $region30: #{tpu_custom_call.1} parent=23 // pred_check_branch
          %239 = sbr.rel (%p237) target = $region32
        $region31: #{tpu_custom_call.1} parent=23 // pred_region
          %p240 = scmp.lt.s32.totalorder %s29, 1
          %s241 = scalar_select %p240, %s29, 1
          %s242 = scalar_lea.vmem %s1, %s241
        $region32: #{tpu_custom_call.1} parent=23 // pred_fallthru
          _
      $region24: #{tpu_custom_call.1} parent=5 // pred_fallthru
        _
      %p243 = scmp.le.s32.totalorder 1, %s22
      %p244 = scmp.lt.s32.totalorder %s22, 3
      %p245 = pnand %p243, %p244
      %p246 = pneg %p245
      // Predicated region
      $region33: #{tpu_custom_call.1} parent=5 // pred_check
        _
      $region34: #{tpu_custom_call.1} parent=5 // pred_check_branch
        %248 = sbr.rel (%p245) target = $region36
      $region35: #{tpu_custom_call.1} parent=5 // pred_region
        %s249 = ssub.s32 %s22, 1
        %s250 = sand.u32 %s47, 1
        %s251 = scalar_lea.sflag [#allocation3], %s250
        %s252 = sand.u32 %s47, 1
        %s253 = smul.addr %s252, 8
        %s254 = scalar_lea.vmem [#allocation2], %s253
        // Predicated region
        $region37: #{tpu_custom_call.1} parent=35 // pred_check
          %p255 = pneg %p60
        $region38: #{tpu_custom_call.1} parent=35 // pred_check_branch
          %257 = sbr.rel (%p255) target = $region40
        $region39: #{tpu_custom_call.1} parent=35 // pred_region
          %258 = dma.done %s251, 128
        $region40: #{tpu_custom_call.1} parent=35 // pred_fallthru
          _
        // Predicated region
        $region41: #{tpu_custom_call.1} parent=35 // pred_check
          %p259 = pneg %p107
        $region42: #{tpu_custom_call.1} parent=35 // pred_check_branch
          %261 = sbr.rel (%p259) target = $region44
        $region43: #{tpu_custom_call.1} parent=35 // pred_region
          %262 = dma.done [#allocation6], 512
        $region44: #{tpu_custom_call.1} parent=35 // pred_fallthru
          _
        %s263 = sand.u32 %s47, 1
        %s264 = scalar_lea.sflag [#allocation3], %s263
        %s265 = sand.u32 %s47, 1
        %s266 = smul.addr %s265, 8
        %s267 = scalar_lea.vmem [#allocation2], %s266
        %p268 = pneg %p60
        %p269 = pneg %p57
        %p270 = scmp.lt.s32.totalorder %s31, 1
        %s271 = scalar_select %p270, %s31, 1
        %s272 = scalar_lea.vmem %s1, %s271
        %p273 = pneg %p86
        %p274 = pneg %p83
        %p275 = pneg %p107
        %p276 = pneg %p104
        %p277 = pneg %p128
        %p278 = pneg %p125
        %p279 = pneg %p156
        %p280 = pneg %p153
        %s281 = sand.u32 %s143, 1
        %s282 = scalar_lea.sflag [#allocation4], %s281
        %s283 = sand.u32 %s143, 1
        %s284 = smul.addr %s283, 8
        %s285 = scalar_lea.vmem [#allocation7], %s284
        %p286 = pneg %p184
        %p287 = pneg %p181
        %s288 = sand.u32 %s171, 1
        %s289 = scalar_lea.sflag [#allocation9], %s288
        %s290 = sand.u32 %s171, 1
        %s291 = smul.addr %s290, 32
        %s292 = scalar_lea.vmem [#allocation8], %s291
        %p293 = scmp.lt.s32.totalorder %s31, 1
        %s294 = scalar_select %p293, %s31, 1
        %s295 = scalar_lea.vmem %s1, %s294
        %s296 = smul.u32 4, %s32
        %v297 = vld [vmem:[%s254] sm:$0xff]
        %s298 = smul.u32 %s32, 32
        %s299 = scalar_lea.vmem [#allocation5], %s298
        %v300 = vld [vmem:[%s299] sm:$0xff]
        %v301 = vld [vmem:[%s299 + $0x8] sm:$0xff]
        %v302 = vld [vmem:[%s299 + $0x10] sm:$0xff]
        %v303 = vld [vmem:[%s299 + $0x18] sm:$0xff]
        %s304 = scalar_lea.vmem %s3, %s32
        %v305 = vld [vmem:[%s304] sm:$0x1]
        %v306 = vld [vmem:[%s295] sm:$0x1]
        %v308 = vlaneseq
        %v309 = vshrl.u32 %v308, 7
        %v310 = vsub.s32 0, %v309
        %v311 = vrot.slane %v305, %v310
        %vm313 = vcmask 261120
        %v315 = vsel %vm313, %v297, 0
        %317 = vmatprep.subr.mxu0 0.0
        %318 = vmatpush1.msra.mxu0 %v300
        %319 = vmatprep.subr.mxu0 0.0
        %320 = vmatpush1.msra.mxu0 %v301
        %321 = vmatprep.subr.mxu0 0.0
        %322 = vmatpush1.msra.mxu0 %v302
        %323 = vmatprep.subr.mxu0 0.0
        %324 = vmatpush1.msra.mxu0 %v303
        %325 = vmatprep.subr.mxu0 0.0
        %326 = vmatpush1.msra.mxu0 0.0
        %327 = vmatprep.subr.mxu0 0.0
        %328 = vmatpush1.msra.mxu0 0.0
        %329 = vmatprep.subr.mxu0 0.0
        %330 = vmatpush1.msra.mxu0 0.0
        %331 = vmatprep.subr.mxu0 0.0
        %332 = vmatpush1.msra.mxu0 0.0
        %333 = vmatprep.subr.mxu0 0.0
        %334 = vmatpush1.msra.mxu0 0.0
        %335 = vmatprep.subr.mxu0 0.0
        %336 = vmatpush1.msra.mxu0 0.0
        %337 = vmatprep.subr.mxu0 0.0
        %338 = vmatpush1.msra.mxu0 0.0
        %339 = vmatprep.subr.mxu0 0.0
        %340 = vmatpush1.msra.mxu0 0.0
        %341 = vmatprep.subr.mxu0 0.0
        %342 = vmatpush1.msra.mxu0 0.0
        %343 = vmatprep.subr.mxu0 0.0
        %344 = vmatpush1.msra.mxu0 0.0
        %345 = vmatprep.subr.mxu0 0.0
        %346 = vmatpush1.msra.mxu0 0.0
        %347 = vmatprep.subr.mxu0 0.0
        %348 = vmatpush1.msra.mxu0 0.0
        %349 = vmatprep.subr.mxu0 0.0
        %350 = vmatpush1.msra.mxu0 0.0
        %351 = vmatprep.subr.mxu0 0.0
        %352 = vmatpush1.msra.mxu0 0.0
        %353 = vmatprep.subr.mxu0 0.0
        %354 = vmatpush1.msra.mxu0 0.0
        %355 = vmatprep.subr.mxu0 0.0
        %356 = vmatpush1.msra.mxu0 0.0
        %357 = vmatprep.subr.mxu0 0.0
        %358 = vmatpush1.msra.mxu0 0.0
        %359 = vmatprep.subr.mxu0 0.0
        %360 = vmatpush1.msra.mxu0 0.0
        %361 = vmatprep.subr.mxu0 0.0
        %362 = vmatpush1.msra.mxu0 0.0
        %363 = vmatprep.subr.mxu0 0.0
        %364 = vmatpush1.msra.mxu0 0.0
        %365 = vmatprep.subr.mxu0 0.0
        %366 = vmatpush1.msra.mxu0 0.0
        %367 = vmatprep.subr.mxu0 0.0
        %368 = vmatpush1.msra.mxu0 0.0
        %369 = vmatprep.subr.mxu0 0.0
        %370 = vmatpush1.msra.mxu0 0.0
        %371 = vmatprep.subr.mxu0 0.0
        %372 = vmatpush1.msra.mxu0 0.0
        %373 = vmatprep.subr.mxu0 0.0
        %374 = vmatpush1.msra.mxu0 0.0
        %375 = vmatprep.subr.mxu0 0.0
        %376 = vmatpush1.msra.mxu0 0.0
        %377 = vmatprep.subr.mxu0 0.0
        %378 = vmatpush1.msra.mxu0 0.0
        %379 = vmatprep.subr.mxu0 0.0
        %380 = vmatpush1.msra.mxu0 0.0
        %381 = vmatprep.mubr.f32.mxu0 0.0
        %382 = vmatmul.mubr.f32.gmra.mrb[0].mxu0 %v315
        %v383 = vpop.f32.mrb[0].mxu0
        %v384 = vadd.f32 %v311, %v383
        %v385 = vpop.f32.mrb[0].mxu0
        %386 = vdwg.mxu0
        %v388 = vlaneseq
        %v389 = vshrl.u32 %v388, 7
        %v390 = vsub.s32 0, %v389
        %v391 = vrot.slane %v306, %v390
        %394 = vrot.lane.b32.xlu0 %v384, 96
        %v395 = vpop.permute.xlu0 %394
        %vm396 = vcmask 64512
        %v397 = vsel %vm396, %v384, 0
        %v399 = vsel %vm396, %v395, 0
        %401 = vmatprep.subr.mxu0 0.0
        %402 = vmatpush1.xpose.msra.mxu0 %v399
        %403 = vmatprep.subr.mxu0 0.0
        %404 = vmatpush1.xpose.msra.mxu0 0.0
        %405 = vmatprep.subr.mxu0 0.0
        %406 = vmatpush1.xpose.msra.mxu0 0.0
        %407 = vmatprep.subr.mxu0 0.0
        %408 = vmatpush1.xpose.msra.mxu0 0.0
        %409 = vmatprep.subr.mxu0 0.0
        %410 = vmatpush1.xpose.msra.mxu0 0.0
        %411 = vmatprep.subr.mxu0 0.0
        %412 = vmatpush1.xpose.msra.mxu0 0.0
        %413 = vmatprep.subr.mxu0 0.0
        %414 = vmatpush1.xpose.msra.mxu0 0.0
        %415 = vmatprep.subr.mxu0 0.0
        %416 = vmatpush1.xpose.msra.mxu0 0.0
        %417 = vmatprep.subr.mxu0 0.0
        %418 = vmatpush1.xpose.msra.mxu0 0.0
        %419 = vmatprep.subr.mxu0 0.0
        %420 = vmatpush1.xpose.msra.mxu0 0.0
        %421 = vmatprep.subr.mxu0 0.0
        %422 = vmatpush1.xpose.msra.mxu0 0.0
        %423 = vmatprep.subr.mxu0 0.0
        %424 = vmatpush1.xpose.msra.mxu0 0.0
        %425 = vmatprep.subr.mxu0 0.0
        %426 = vmatpush1.xpose.msra.mxu0 0.0
        %427 = vmatprep.subr.mxu0 0.0
        %428 = vmatpush1.xpose.msra.mxu0 0.0
        %429 = vmatprep.subr.mxu0 0.0
        %430 = vmatpush1.xpose.msra.mxu0 0.0
        %431 = vmatprep.subr.mxu0 0.0
        %432 = vmatpush1.xpose.msra.mxu0 0.0
        %433 = vmatprep.subr.mxu0 0.0
        %434 = vmatpush1.xpose.msra.mxu0 0.0
        %435 = vmatprep.subr.mxu0 0.0
        %436 = vmatpush1.xpose.msra.mxu0 0.0
        %437 = vmatprep.subr.mxu0 0.0
        %438 = vmatpush1.xpose.msra.mxu0 0.0
        %439 = vmatprep.subr.mxu0 0.0
        %440 = vmatpush1.xpose.msra.mxu0 0.0
        %441 = vmatprep.subr.mxu0 0.0
        %442 = vmatpush1.xpose.msra.mxu0 0.0
        %443 = vmatprep.subr.mxu0 0.0
        %444 = vmatpush1.xpose.msra.mxu0 0.0
        %445 = vmatprep.subr.mxu0 0.0
        %446 = vmatpush1.xpose.msra.mxu0 0.0
        %447 = vmatprep.subr.mxu0 0.0
        %448 = vmatpush1.xpose.msra.mxu0 0.0
        %449 = vmatprep.subr.mxu0 0.0
        %450 = vmatpush1.xpose.msra.mxu0 0.0
        %451 = vmatprep.subr.mxu0 0.0
        %452 = vmatpush1.xpose.msra.mxu0 0.0
        %453 = vmatprep.subr.mxu0 0.0
        %454 = vmatpush1.xpose.msra.mxu0 0.0
        %455 = vmatprep.subr.mxu0 0.0
        %456 = vmatpush1.xpose.msra.mxu0 0.0
        %457 = vmatprep.subr.mxu0 0.0
        %458 = vmatpush1.xpose.msra.mxu0 0.0
        %459 = vmatprep.subr.mxu0 0.0
        %460 = vmatpush1.xpose.msra.mxu0 0.0
        %461 = vmatprep.subr.mxu0 0.0
        %462 = vmatpush1.xpose.msra.mxu0 0.0
        %463 = vmatprep.subr.mxu0 0.0
        %464 = vmatpush1.xpose.msra.mxu0 0.0
        %465 = vmatprep.mubr.f32.mxu0 0.0
        %466 = vmatmul.mubr.f32.gmra.mrb[0].mxu0 %v397
        %v467 = vpop.f32.mrb[0].mxu0
        %v468 = vadd.f32 %v391, %v467
        %v469 = vpop.f32.mrb[0].mxu0
        %470 = vdwg.mxu0
        %v471 = vsel %vm396, %v468, -inf
        %472 = vmax.xlane.f32.xlu0 %v471
        %v473 = vpop.xlane.xlu0 %472
        %v474 = vsub.f32 %v468, %v473
        %v475 = vmul.f32 %v474, 1.442695
        %v476 = vpow.pop %v475
        %v477 = vsel %vm396, %v476, 0.0
        %478 = vadd.xlane.f32.xlu0 %v477
        %v479 = vpop.xlane.xlu0 %478
        %v480 = vrcp.pop %v479
        %v481 = vmul.f32 %v476, %v480
        %482 = vrot.lane.b32.xlu0 %v384, 64
        %v483 = vpop.permute.xlu0 %482
        %v486 = vsel %vm396, %v481, 0
        %488 = vmatprep.subr.mxu0 0.0
        %489 = vmatpush1.msra.mxu0 %v483
        %490 = vmatprep.subr.mxu0 0.0
        %491 = vmatpush1.msra.mxu0 0.0
        %492 = vmatprep.subr.mxu0 0.0
        %493 = vmatpush1.msra.mxu0 0.0
        %494 = vmatprep.subr.mxu0 0.0
        %495 = vmatpush1.msra.mxu0 0.0
        %496 = vmatprep.subr.mxu0 0.0
        %497 = vmatpush1.msra.mxu0 0.0
        %498 = vmatprep.subr.mxu0 0.0
        %499 = vmatpush1.msra.mxu0 0.0
        %500 = vmatprep.subr.mxu0 0.0
        %501 = vmatpush1.msra.mxu0 0.0
        %502 = vmatprep.subr.mxu0 0.0
        %503 = vmatpush1.msra.mxu0 0.0
        %504 = vmatprep.subr.mxu0 0.0
        %505 = vmatpush1.msra.mxu0 0.0
        %506 = vmatprep.subr.mxu0 0.0
        %507 = vmatpush1.msra.mxu0 0.0
        %508 = vmatprep.subr.mxu0 0.0
        %509 = vmatpush1.msra.mxu0 0.0
        %510 = vmatprep.subr.mxu0 0.0
        %511 = vmatpush1.msra.mxu0 0.0
        %512 = vmatprep.subr.mxu0 0.0
        %513 = vmatpush1.msra.mxu0 0.0
        %514 = vmatprep.subr.mxu0 0.0
        %515 = vmatpush1.msra.mxu0 0.0
        %516 = vmatprep.subr.mxu0 0.0
        %517 = vmatpush1.msra.mxu0 0.0
        %518 = vmatprep.subr.mxu0 0.0
        %519 = vmatpush1.msra.mxu0 0.0
        %520 = vmatprep.subr.mxu0 0.0
        %521 = vmatpush1.msra.mxu0 0.0
        %522 = vmatprep.subr.mxu0 0.0
        %523 = vmatpush1.msra.mxu0 0.0
        %524 = vmatprep.subr.mxu0 0.0
        %525 = vmatpush1.msra.mxu0 0.0
        %526 = vmatprep.subr.mxu0 0.0
        %527 = vmatpush1.msra.mxu0 0.0
        %528 = vmatprep.subr.mxu0 0.0
        %529 = vmatpush1.msra.mxu0 0.0
        %530 = vmatprep.subr.mxu0 0.0
        %531 = vmatpush1.msra.mxu0 0.0
        %532 = vmatprep.subr.mxu0 0.0
        %533 = vmatpush1.msra.mxu0 0.0
        %534 = vmatprep.subr.mxu0 0.0
        %535 = vmatpush1.msra.mxu0 0.0
        %536 = vmatprep.subr.mxu0 0.0
        %537 = vmatpush1.msra.mxu0 0.0
        %538 = vmatprep.subr.mxu0 0.0
        %539 = vmatpush1.msra.mxu0 0.0
        %540 = vmatprep.subr.mxu0 0.0
        %541 = vmatpush1.msra.mxu0 0.0
        %542 = vmatprep.subr.mxu0 0.0
        %543 = vmatpush1.msra.mxu0 0.0
        %544 = vmatprep.subr.mxu0 0.0
        %545 = vmatpush1.msra.mxu0 0.0
        %546 = vmatprep.subr.mxu0 0.0
        %547 = vmatpush1.msra.mxu0 0.0
        %548 = vmatprep.subr.mxu0 0.0
        %549 = vmatpush1.msra.mxu0 0.0
        %550 = vmatprep.subr.mxu0 0.0
        %551 = vmatpush1.msra.mxu0 0.0
        %552 = vmatprep.mubr.f32.mxu0 0.0
        %553 = vmatmul.mubr.f32.gmra.mrb[0].mxu0 %v486
        %v554 = vpop.f32.mrb[0].mxu0
        %v555 = vadd.f32 0.0, %v554
        %v556 = vpop.f32.mrb[0].mxu0
        %557 = vdwg.mxu0
        %558 = vst.msk [vmem:[%s292] sm:$0xff] %vm396, %v481
        %559 = vrot.lane.b32.xlu0 %v384, 120
        %v560 = vpop.permute.xlu0 %559
        %561 = vrot.lane.b32.xlu0 %v384, 88
        %v562 = vpop.permute.xlu0 %561
        %v563 = vsel %vm396, %v560, 0
        %v565 = vsel %vm396, %v562, 0
        %567 = vmatprep.subr.mxu0 0.0
        %568 = vmatpush1.xpose.msra.mxu0 %v565
        %569 = vmatprep.subr.mxu0 0.0
        %570 = vmatpush1.xpose.msra.mxu0 0.0
        %571 = vmatprep.subr.mxu0 0.0
        %572 = vmatpush1.xpose.msra.mxu0 0.0
        %573 = vmatprep.subr.mxu0 0.0
        %574 = vmatpush1.xpose.msra.mxu0 0.0
        %575 = vmatprep.subr.mxu0 0.0
        %576 = vmatpush1.xpose.msra.mxu0 0.0
        %577 = vmatprep.subr.mxu0 0.0
        %578 = vmatpush1.xpose.msra.mxu0 0.0
        %579 = vmatprep.subr.mxu0 0.0
        %580 = vmatpush1.xpose.msra.mxu0 0.0
        %581 = vmatprep.subr.mxu0 0.0
        %582 = vmatpush1.xpose.msra.mxu0 0.0
        %583 = vmatprep.subr.mxu0 0.0
        %584 = vmatpush1.xpose.msra.mxu0 0.0
        %585 = vmatprep.subr.mxu0 0.0
        %586 = vmatpush1.xpose.msra.mxu0 0.0
        %587 = vmatprep.subr.mxu0 0.0
        %588 = vmatpush1.xpose.msra.mxu0 0.0
        %589 = vmatprep.subr.mxu0 0.0
        %590 = vmatpush1.xpose.msra.mxu0 0.0
        %591 = vmatprep.subr.mxu0 0.0
        %592 = vmatpush1.xpose.msra.mxu0 0.0
        %593 = vmatprep.subr.mxu0 0.0
        %594 = vmatpush1.xpose.msra.mxu0 0.0
        %595 = vmatprep.subr.mxu0 0.0
        %596 = vmatpush1.xpose.msra.mxu0 0.0
        %597 = vmatprep.subr.mxu0 0.0
        %598 = vmatpush1.xpose.msra.mxu0 0.0
        %599 = vmatprep.subr.mxu0 0.0
        %600 = vmatpush1.xpose.msra.mxu0 0.0
        %601 = vmatprep.subr.mxu0 0.0
        %602 = vmatpush1.xpose.msra.mxu0 0.0
        %603 = vmatprep.subr.mxu0 0.0
        %604 = vmatpush1.xpose.msra.mxu0 0.0
        %605 = vmatprep.subr.mxu0 0.0
        %606 = vmatpush1.xpose.msra.mxu0 0.0
        %607 = vmatprep.subr.mxu0 0.0
        %608 = vmatpush1.xpose.msra.mxu0 0.0
        %609 = vmatprep.subr.mxu0 0.0
        %610 = vmatpush1.xpose.msra.mxu0 0.0
        %611 = vmatprep.subr.mxu0 0.0
        %612 = vmatpush1.xpose.msra.mxu0 0.0
        %613 = vmatprep.subr.mxu0 0.0
        %614 = vmatpush1.xpose.msra.mxu0 0.0
        %615 = vmatprep.subr.mxu0 0.0
        %616 = vmatpush1.xpose.msra.mxu0 0.0
        %617 = vmatprep.subr.mxu0 0.0
        %618 = vmatpush1.xpose.msra.mxu0 0.0
        %619 = vmatprep.subr.mxu0 0.0
        %620 = vmatpush1.xpose.msra.mxu0 0.0
        %621 = vmatprep.subr.mxu0 0.0
        %622 = vmatpush1.xpose.msra.mxu0 0.0
        %623 = vmatprep.subr.mxu0 0.0
        %624 = vmatpush1.xpose.msra.mxu0 0.0
        %625 = vmatprep.subr.mxu0 0.0
        %626 = vmatpush1.xpose.msra.mxu0 0.0
        %627 = vmatprep.subr.mxu0 0.0
        %628 = vmatpush1.xpose.msra.mxu0 0.0
        %629 = vmatprep.subr.mxu0 0.0
        %630 = vmatpush1.xpose.msra.mxu0 0.0
        %631 = vmatprep.mubr.f32.mxu0 0.0
        %632 = vmatmul.mubr.f32.gmra.mrb[0].mxu0 %v563
        %v633 = vpop.f32.mrb[0].mxu0
        %v634 = vadd.f32 %v391, %v633
        %v635 = vpop.f32.mrb[0].mxu0
        %636 = vdwg.mxu0
        %v637 = vsel %vm396, %v634, -inf
        %638 = vmax.xlane.f32.xlu0 %v637
        %v639 = vpop.xlane.xlu0 %638
        %v640 = vsub.f32 %v634, %v639
        %v641 = vmul.f32 %v640, 1.442695
        %v642 = vpow.pop %v641
        %v643 = vsel %vm396, %v642, 0.0
        %644 = vadd.xlane.f32.xlu0 %v643
        %v645 = vpop.xlane.xlu0 %644
        %v646 = vrcp.pop %v645
        %v647 = vmul.f32 %v642, %v646
        %648 = vrot.lane.b32.xlu0 %v384, 56
        %v649 = vpop.permute.xlu0 %648
        %v652 = vsel %vm396, %v647, 0
        %654 = vmatprep.subr.mxu0 0.0
        %655 = vmatpush1.msra.mxu0 %v649
        %656 = vmatprep.subr.mxu0 0.0
        %657 = vmatpush1.msra.mxu0 0.0
        %658 = vmatprep.subr.mxu0 0.0
        %659 = vmatpush1.msra.mxu0 0.0
        %660 = vmatprep.subr.mxu0 0.0
        %661 = vmatpush1.msra.mxu0 0.0
        %662 = vmatprep.subr.mxu0 0.0
        %663 = vmatpush1.msra.mxu0 0.0
        %664 = vmatprep.subr.mxu0 0.0
        %665 = vmatpush1.msra.mxu0 0.0
        %666 = vmatprep.subr.mxu0 0.0
        %667 = vmatpush1.msra.mxu0 0.0
        %668 = vmatprep.subr.mxu0 0.0
        %669 = vmatpush1.msra.mxu0 0.0
        %670 = vmatprep.subr.mxu0 0.0
        %671 = vmatpush1.msra.mxu0 0.0
        %672 = vmatprep.subr.mxu0 0.0
        %673 = vmatpush1.msra.mxu0 0.0
        %674 = vmatprep.subr.mxu0 0.0
        %675 = vmatpush1.msra.mxu0 0.0
        %676 = vmatprep.subr.mxu0 0.0
        %677 = vmatpush1.msra.mxu0 0.0
        %678 = vmatprep.subr.mxu0 0.0
        %679 = vmatpush1.msra.mxu0 0.0
        %680 = vmatprep.subr.mxu0 0.0
        %681 = vmatpush1.msra.mxu0 0.0
        %682 = vmatprep.subr.mxu0 0.0
        %683 = vmatpush1.msra.mxu0 0.0
        %684 = vmatprep.subr.mxu0 0.0
        %685 = vmatpush1.msra.mxu0 0.0
        %686 = vmatprep.subr.mxu0 0.0
        %687 = vmatpush1.msra.mxu0 0.0
        %688 = vmatprep.subr.mxu0 0.0
        %689 = vmatpush1.msra.mxu0 0.0
        %690 = vmatprep.subr.mxu0 0.0
        %691 = vmatpush1.msra.mxu0 0.0
        %692 = vmatprep.subr.mxu0 0.0
        %693 = vmatpush1.msra.mxu0 0.0
        %694 = vmatprep.subr.mxu0 0.0
        %695 = vmatpush1.msra.mxu0 0.0
        %696 = vmatprep.subr.mxu0 0.0
        %697 = vmatpush1.msra.mxu0 0.0
        %698 = vmatprep.subr.mxu0 0.0
        %699 = vmatpush1.msra.mxu0 0.0
        %700 = vmatprep.subr.mxu0 0.0
        %701 = vmatpush1.msra.mxu0 0.0
        %702 = vmatprep.subr.mxu0 0.0
        %703 = vmatpush1.msra.mxu0 0.0
        %704 = vmatprep.subr.mxu0 0.0
        %705 = vmatpush1.msra.mxu0 0.0
        %706 = vmatprep.subr.mxu0 0.0
        %707 = vmatpush1.msra.mxu0 0.0
        %708 = vmatprep.subr.mxu0 0.0
        %709 = vmatpush1.msra.mxu0 0.0
        %710 = vmatprep.subr.mxu0 0.0
        %711 = vmatpush1.msra.mxu0 0.0
        %712 = vmatprep.subr.mxu0 0.0
        %713 = vmatpush1.msra.mxu0 0.0
        %714 = vmatprep.subr.mxu0 0.0
        %715 = vmatpush1.msra.mxu0 0.0
        %716 = vmatprep.subr.mxu0 0.0
        %717 = vmatpush1.msra.mxu0 0.0
        %718 = vmatprep.mubr.f32.mxu0 0.0
        %719 = vmatmul.mubr.f32.gmra.mrb[0].mxu0 %v652
        %v720 = vpop.f32.mrb[0].mxu0
        %v721 = vadd.f32 0.0, %v720
        %v722 = vpop.f32.mrb[0].mxu0
        %723 = vdwg.mxu0
        %s724 = scalar_lea.vmem %s292, 8 [#allocation8]
        %725 = vst.msk [vmem:[%s724] sm:$0xff] %vm396, %v647
        %726 = vrot.lane.b32.xlu0 %v384, 112
        %v727 = vpop.permute.xlu0 %726
        %728 = vrot.lane.b32.xlu0 %v384, 80
        %v729 = vpop.permute.xlu0 %728
        %v730 = vsel %vm396, %v727, 0
        %v732 = vsel %vm396, %v729, 0
        %734 = vmatprep.subr.mxu0 0.0
        %735 = vmatpush1.xpose.msra.mxu0 %v732
        %736 = vmatprep.subr.mxu0 0.0
        %737 = vmatpush1.xpose.msra.mxu0 0.0
        %738 = vmatprep.subr.mxu0 0.0
        %739 = vmatpush1.xpose.msra.mxu0 0.0
        %740 = vmatprep.subr.mxu0 0.0
        %741 = vmatpush1.xpose.msra.mxu0 0.0
        %742 = vmatprep.subr.mxu0 0.0
        %743 = vmatpush1.xpose.msra.mxu0 0.0
        %744 = vmatprep.subr.mxu0 0.0
        %745 = vmatpush1.xpose.msra.mxu0 0.0
        %746 = vmatprep.subr.mxu0 0.0
        %747 = vmatpush1.xpose.msra.mxu0 0.0
        %748 = vmatprep.subr.mxu0 0.0
        %749 = vmatpush1.xpose.msra.mxu0 0.0
        %750 = vmatprep.subr.mxu0 0.0
        %751 = vmatpush1.xpose.msra.mxu0 0.0
        %752 = vmatprep.subr.mxu0 0.0
        %753 = vmatpush1.xpose.msra.mxu0 0.0
        %754 = vmatprep.subr.mxu0 0.0
        %755 = vmatpush1.xpose.msra.mxu0 0.0
        %756 = vmatprep.subr.mxu0 0.0
        %757 = vmatpush1.xpose.msra.mxu0 0.0
        %758 = vmatprep.subr.mxu0 0.0
        %759 = vmatpush1.xpose.msra.mxu0 0.0
        %760 = vmatprep.subr.mxu0 0.0
        %761 = vmatpush1.xpose.msra.mxu0 0.0
        %762 = vmatprep.subr.mxu0 0.0
        %763 = vmatpush1.xpose.msra.mxu0 0.0
        %764 = vmatprep.subr.mxu0 0.0
        %765 = vmatpush1.xpose.msra.mxu0 0.0
        %766 = vmatprep.subr.mxu0 0.0
        %767 = vmatpush1.xpose.msra.mxu0 0.0
        %768 = vmatprep.subr.mxu0 0.0
        %769 = vmatpush1.xpose.msra.mxu0 0.0
        %770 = vmatprep.subr.mxu0 0.0
        %771 = vmatpush1.xpose.msra.mxu0 0.0
        %772 = vmatprep.subr.mxu0 0.0
        %773 = vmatpush1.xpose.msra.mxu0 0.0
        %774 = vmatprep.subr.mxu0 0.0
        %775 = vmatpush1.xpose.msra.mxu0 0.0
        %776 = vmatprep.subr.mxu0 0.0
        %777 = vmatpush1.xpose.msra.mxu0 0.0
        %778 = vmatprep.subr.mxu0 0.0
        %779 = vmatpush1.xpose.msra.mxu0 0.0
        %780 = vmatprep.subr.mxu0 0.0
        %781 = vmatpush1.xpose.msra.mxu0 0.0
        %782 = vmatprep.subr.mxu0 0.0
        %783 = vmatpush1.xpose.msra.mxu0 0.0
        %784 = vmatprep.subr.mxu0 0.0
        %785 = vmatpush1.xpose.msra.mxu0 0.0
        %786 = vmatprep.subr.mxu0 0.0
        %787 = vmatpush1.xpose.msra.mxu0 0.0
        %788 = vmatprep.subr.mxu0 0.0
        %789 = vmatpush1.xpose.msra.mxu0 0.0
        %790 = vmatprep.subr.mxu0 0.0
        %791 = vmatpush1.xpose.msra.mxu0 0.0
        %792 = vmatprep.subr.mxu0 0.0
        %793 = vmatpush1.xpose.msra.mxu0 0.0
        %794 = vmatprep.subr.mxu0 0.0
        %795 = vmatpush1.xpose.msra.mxu0 0.0
        %796 = vmatprep.subr.mxu0 0.0
        %797 = vmatpush1.xpose.msra.mxu0 0.0
        %798 = vmatprep.mubr.f32.mxu0 0.0
        %799 = vmatmul.mubr.f32.gmra.mrb[0].mxu0 %v730
        %v800 = vpop.f32.mrb[0].mxu0
        %v801 = vadd.f32 %v391, %v800
        %v802 = vpop.f32.mrb[0].mxu0
        %803 = vdwg.mxu0
        %v804 = vsel %vm396, %v801, -inf
        %805 = vmax.xlane.f32.xlu0 %v804
        %v806 = vpop.xlane.xlu0 %805
        %v807 = vsub.f32 %v801, %v806
        %v808 = vmul.f32 %v807, 1.442695
        %v809 = vpow.pop %v808
        %v810 = vsel %vm396, %v809, 0.0
        %811 = vadd.xlane.f32.xlu0 %v810
        %v812 = vpop.xlane.xlu0 %811
        %v813 = vrcp.pop %v812
        %v814 = vmul.f32 %v809, %v813
        %815 = vrot.lane.b32.xlu0 %v384, 48
        %v816 = vpop.permute.xlu0 %815
        %v819 = vsel %vm396, %v814, 0
        %821 = vmatprep.subr.mxu0 0.0
        %822 = vmatpush1.msra.mxu0 %v816
        %823 = vmatprep.subr.mxu0 0.0
        %824 = vmatpush1.msra.mxu0 0.0
        %825 = vmatprep.subr.mxu0 0.0
        %826 = vmatpush1.msra.mxu0 0.0
        %827 = vmatprep.subr.mxu0 0.0
        %828 = vmatpush1.msra.mxu0 0.0
        %829 = vmatprep.subr.mxu0 0.0
        %830 = vmatpush1.msra.mxu0 0.0
        %831 = vmatprep.subr.mxu0 0.0
        %832 = vmatpush1.msra.mxu0 0.0
        %833 = vmatprep.subr.mxu0 0.0
        %834 = vmatpush1.msra.mxu0 0.0
        %835 = vmatprep.subr.mxu0 0.0
        %836 = vmatpush1.msra.mxu0 0.0
        %837 = vmatprep.subr.mxu0 0.0
        %838 = vmatpush1.msra.mxu0 0.0
        %839 = vmatprep.subr.mxu0 0.0
        %840 = vmatpush1.msra.mxu0 0.0
        %841 = vmatprep.subr.mxu0 0.0
        %842 = vmatpush1.msra.mxu0 0.0
        %843 = vmatprep.subr.mxu0 0.0
        %844 = vmatpush1.msra.mxu0 0.0
        %845 = vmatprep.subr.mxu0 0.0
        %846 = vmatpush1.msra.mxu0 0.0
        %847 = vmatprep.subr.mxu0 0.0
        %848 = vmatpush1.msra.mxu0 0.0
        %849 = vmatprep.subr.mxu0 0.0
        %850 = vmatpush1.msra.mxu0 0.0
        %851 = vmatprep.subr.mxu0 0.0
        %852 = vmatpush1.msra.mxu0 0.0
        %853 = vmatprep.subr.mxu0 0.0
        %854 = vmatpush1.msra.mxu0 0.0
        %855 = vmatprep.subr.mxu0 0.0
        %856 = vmatpush1.msra.mxu0 0.0
        %857 = vmatprep.subr.mxu0 0.0
        %858 = vmatpush1.msra.mxu0 0.0
        %859 = vmatprep.subr.mxu0 0.0
        %860 = vmatpush1.msra.mxu0 0.0
        %861 = vmatprep.subr.mxu0 0.0
        %862 = vmatpush1.msra.mxu0 0.0
        %863 = vmatprep.subr.mxu0 0.0
        %864 = vmatpush1.msra.mxu0 0.0
        %865 = vmatprep.subr.mxu0 0.0
        %866 = vmatpush1.msra.mxu0 0.0
        %867 = vmatprep.subr.mxu0 0.0
        %868 = vmatpush1.msra.mxu0 0.0
        %869 = vmatprep.subr.mxu0 0.0
        %870 = vmatpush1.msra.mxu0 0.0
        %871 = vmatprep.subr.mxu0 0.0
        %872 = vmatpush1.msra.mxu0 0.0
        %873 = vmatprep.subr.mxu0 0.0
        %874 = vmatpush1.msra.mxu0 0.0
        %875 = vmatprep.subr.mxu0 0.0
        %876 = vmatpush1.msra.mxu0 0.0
        %877 = vmatprep.subr.mxu0 0.0
        %878 = vmatpush1.msra.mxu0 0.0
        %879 = vmatprep.subr.mxu0 0.0
        %880 = vmatpush1.msra.mxu0 0.0
        %881 = vmatprep.subr.mxu0 0.0
        %882 = vmatpush1.msra.mxu0 0.0
        %883 = vmatprep.subr.mxu0 0.0
        %884 = vmatpush1.msra.mxu0 0.0
        %885 = vmatprep.mubr.f32.mxu0 0.0
        %886 = vmatmul.mubr.f32.gmra.mrb[0].mxu0 %v819
        %v887 = vpop.f32.mrb[0].mxu0
        %v888 = vadd.f32 0.0, %v887
        %v889 = vpop.f32.mrb[0].mxu0
        %890 = vdwg.mxu0
        %s891 = scalar_lea.vmem %s292, 16 [#allocation8]
        %892 = vst.msk [vmem:[%s891] sm:$0xff] %vm396, %v814
        %893 = vrot.lane.b32.xlu0 %v384, 104
        %v894 = vpop.permute.xlu0 %893
        %895 = vrot.lane.b32.xlu0 %v384, 72
        %v896 = vpop.permute.xlu0 %895
        %v897 = vsel %vm396, %v894, 0
        %v899 = vsel %vm396, %v896, 0
        %901 = vmatprep.subr.mxu0 0.0
        %902 = vmatpush1.xpose.msra.mxu0 %v899
        %903 = vmatprep.subr.mxu0 0.0
        %904 = vmatpush1.xpose.msra.mxu0 0.0
        %905 = vmatprep.subr.mxu0 0.0
        %906 = vmatpush1.xpose.msra.mxu0 0.0
        %907 = vmatprep.subr.mxu0 0.0
        %908 = vmatpush1.xpose.msra.mxu0 0.0
        %909 = vmatprep.subr.mxu0 0.0
        %910 = vmatpush1.xpose.msra.mxu0 0.0
        %911 = vmatprep.subr.mxu0 0.0
        %912 = vmatpush1.xpose.msra.mxu0 0.0
        %913 = vmatprep.subr.mxu0 0.0
        %914 = vmatpush1.xpose.msra.mxu0 0.0
        %915 = vmatprep.subr.mxu0 0.0
        %916 = vmatpush1.xpose.msra.mxu0 0.0
        %917 = vmatprep.subr.mxu0 0.0
        %918 = vmatpush1.xpose.msra.mxu0 0.0
        %919 = vmatprep.subr.mxu0 0.0
        %920 = vmatpush1.xpose.msra.mxu0 0.0
        %921 = vmatprep.subr.mxu0 0.0
        %922 = vmatpush1.xpose.msra.mxu0 0.0
        %923 = vmatprep.subr.mxu0 0.0
        %924 = vmatpush1.xpose.msra.mxu0 0.0
        %925 = vmatprep.subr.mxu0 0.0
        %926 = vmatpush1.xpose.msra.mxu0 0.0
        %927 = vmatprep.subr.mxu0 0.0
        %928 = vmatpush1.xpose.msra.mxu0 0.0
        %929 = vmatprep.subr.mxu0 0.0
        %930 = vmatpush1.xpose.msra.mxu0 0.0
        %931 = vmatprep.subr.mxu0 0.0
        %932 = vmatpush1.xpose.msra.mxu0 0.0
        %933 = vmatprep.subr.mxu0 0.0
        %934 = vmatpush1.xpose.msra.mxu0 0.0
        %935 = vmatprep.subr.mxu0 0.0
        %936 = vmatpush1.xpose.msra.mxu0 0.0
        %937 = vmatprep.subr.mxu0 0.0
        %938 = vmatpush1.xpose.msra.mxu0 0.0
        %939 = vmatprep.subr.mxu0 0.0
        %940 = vmatpush1.xpose.msra.mxu0 0.0
        %941 = vmatprep.subr.mxu0 0.0
        %942 = vmatpush1.xpose.msra.mxu0 0.0
        %943 = vmatprep.subr.mxu0 0.0
        %944 = vmatpush1.xpose.msra.mxu0 0.0
        %945 = vmatprep.subr.mxu0 0.0
        %946 = vmatpush1.xpose.msra.mxu0 0.0
        %947 = vmatprep.subr.mxu0 0.0
        %948 = vmatpush1.xpose.msra.mxu0 0.0
        %949 = vmatprep.subr.mxu0 0.0
        %950 = vmatpush1.xpose.msra.mxu0 0.0
        %951 = vmatprep.subr.mxu0 0.0
        %952 = vmatpush1.xpose.msra.mxu0 0.0
        %953 = vmatprep.subr.mxu0 0.0
        %954 = vmatpush1.xpose.msra.mxu0 0.0
        %955 = vmatprep.subr.mxu0 0.0
        %956 = vmatpush1.xpose.msra.mxu0 0.0
        %957 = vmatprep.subr.mxu0 0.0
        %958 = vmatpush1.xpose.msra.mxu0 0.0
        %959 = vmatprep.subr.mxu0 0.0
        %960 = vmatpush1.xpose.msra.mxu0 0.0
        %961 = vmatprep.subr.mxu0 0.0
        %962 = vmatpush1.xpose.msra.mxu0 0.0
        %963 = vmatprep.subr.mxu0 0.0
        %964 = vmatpush1.xpose.msra.mxu0 0.0
        %965 = vmatprep.mubr.f32.mxu0 0.0
        %966 = vmatmul.mubr.f32.gmra.mrb[0].mxu0 %v897
        %v967 = vpop.f32.mrb[0].mxu0
        %v968 = vadd.f32 %v391, %v967
        %v969 = vpop.f32.mrb[0].mxu0
        %970 = vdwg.mxu0
        %v971 = vsel %vm396, %v968, -inf
        %972 = vmax.xlane.f32.xlu0 %v971
        %v973 = vpop.xlane.xlu0 %972
        %v974 = vsub.f32 %v968, %v973
        %v975 = vmul.f32 %v974, 1.442695
        %v976 = vpow.pop %v975
        %v977 = vsel %vm396, %v976, 0.0
        %978 = vadd.xlane.f32.xlu0 %v977
        %v979 = vpop.xlane.xlu0 %978
        %v980 = vrcp.pop %v979
        %v981 = vmul.f32 %v976, %v980
        %982 = vrot.lane.b32.xlu0 %v384, 40
        %v983 = vpop.permute.xlu0 %982
        %v986 = vsel %vm396, %v981, 0
        %988 = vmatprep.subr.mxu0 0.0
        %989 = vmatpush1.msra.mxu0 %v983
        %990 = vmatprep.subr.mxu0 0.0
        %991 = vmatpush1.msra.mxu0 0.0
        %992 = vmatprep.subr.mxu0 0.0
        %993 = vmatpush1.msra.mxu0 0.0
        %994 = vmatprep.subr.mxu0 0.0
        %995 = vmatpush1.msra.mxu0 0.0
        %996 = vmatprep.subr.mxu0 0.0
        %997 = vmatpush1.msra.mxu0 0.0
        %998 = vmatprep.subr.mxu0 0.0
        %999 = vmatpush1.msra.mxu0 0.0
        %1000 = vmatprep.subr.mxu0 0.0
        %1001 = vmatpush1.msra.mxu0 0.0
        %1002 = vmatprep.subr.mxu0 0.0
        %1003 = vmatpush1.msra.mxu0 0.0
        %1004 = vmatprep.subr.mxu0 0.0
        %1005 = vmatpush1.msra.mxu0 0.0
        %1006 = vmatprep.subr.mxu0 0.0
        %1007 = vmatpush1.msra.mxu0 0.0
        %1008 = vmatprep.subr.mxu0 0.0
        %1009 = vmatpush1.msra.mxu0 0.0
        %1010 = vmatprep.subr.mxu0 0.0
        %1011 = vmatpush1.msra.mxu0 0.0
        %1012 = vmatprep.subr.mxu0 0.0
        %1013 = vmatpush1.msra.mxu0 0.0
        %1014 = vmatprep.subr.mxu0 0.0
        %1015 = vmatpush1.msra.mxu0 0.0
        %1016 = vmatprep.subr.mxu0 0.0
        %1017 = vmatpush1.msra.mxu0 0.0
        %1018 = vmatprep.subr.mxu0 0.0
        %1019 = vmatpush1.msra.mxu0 0.0
        %1020 = vmatprep.subr.mxu0 0.0
        %1021 = vmatpush1.msra.mxu0 0.0
        %1022 = vmatprep.subr.mxu0 0.0
        %1023 = vmatpush1.msra.mxu0 0.0
        %1024 = vmatprep.subr.mxu0 0.0
        %1025 = vmatpush1.msra.mxu0 0.0
        %1026 = vmatprep.subr.mxu0 0.0
        %1027 = vmatpush1.msra.mxu0 0.0
        %1028 = vmatprep.subr.mxu0 0.0
        %1029 = vmatpush1.msra.mxu0 0.0
        %1030 = vmatprep.subr.mxu0 0.0
        %1031 = vmatpush1.msra.mxu0 0.0
        %1032 = vmatprep.subr.mxu0 0.0
        %1033 = vmatpush1.msra.mxu0 0.0
        %1034 = vmatprep.subr.mxu0 0.0
        %1035 = vmatpush1.msra.mxu0 0.0
        %1036 = vmatprep.subr.mxu0 0.0
        %1037 = vmatpush1.msra.mxu0 0.0
        %1038 = vmatprep.subr.mxu0 0.0
        %1039 = vmatpush1.msra.mxu0 0.0
        %1040 = vmatprep.subr.mxu0 0.0
        %1041 = vmatpush1.msra.mxu0 0.0
        %1042 = vmatprep.subr.mxu0 0.0
        %1043 = vmatpush1.msra.mxu0 0.0
        %1044 = vmatprep.subr.mxu0 0.0
        %1045 = vmatpush1.msra.mxu0 0.0
        %1046 = vmatprep.subr.mxu0 0.0
        %1047 = vmatpush1.msra.mxu0 0.0
        %1048 = vmatprep.subr.mxu0 0.0
        %1049 = vmatpush1.msra.mxu0 0.0
        %1050 = vmatprep.subr.mxu0 0.0
        %1051 = vmatpush1.msra.mxu0 0.0
        %1052 = vmatprep.mubr.f32.mxu0 0.0
        %1053 = vmatmul.mubr.f32.gmra.mrb[0].mxu0 %v986
        %v1054 = vpop.f32.mrb[0].mxu0
        %v1055 = vadd.f32 0.0, %v1054
        %v1056 = vpop.f32.mrb[0].mxu0
        %1057 = vdwg.mxu0
        %s1058 = scalar_lea.vmem %s292, 24 [#allocation8]
        %1059 = vst.msk [vmem:[%s1058] sm:$0xff] %vm396, %v981
        %1061 = vrot.lane.b32.xlu0 %v721, 8
        %v1062 = vpop.permute.xlu0 %1061
        %1065 = vrot.lane.b32.xlu0 %v888, 16
        %v1066 = vpop.permute.xlu0 %1065
        %1069 = vrot.lane.b32.xlu0 %v1055, 24
        %v1070 = vpop.permute.xlu0 %1069
        %v1072 = vsel %vm396, %v555, %v1062
        %vm1073 = vcmask 130048
        %v1074 = vsel %vm1073, %v1072, %v1066
        %vm1075 = vcmask 195584
        %v1076 = vsel %vm1075, %v1074, %v1070
        %1077 = vst.msk [vmem:[%s285] sm:$0xff] %vm313, %v1076
        %s1078 = sand.u32 %s143, 1
        %s1079 = scalar_lea.sflag [#allocation4], %s1078
        %s1080 = sand.u32 %s143, 1
        %s1081 = smul.addr %s1080, 8
        %s1082 = scalar_lea.vmem [#allocation7], %s1081
        %s1083 = sand.u32 %s171, 1
        %s1084 = scalar_lea.sflag [#allocation9], %s1083
        %s1085 = sand.u32 %s171, 1
        %s1086 = smul.addr %s1085, 32
        %s1087 = scalar_lea.vmem [#allocation8], %s1086
        // Predicated region
        $region45: #{tpu_custom_call.1} parent=35 // pred_check
          %p1088 = pneg %p153
        $region46: #{tpu_custom_call.1} parent=35 // pred_check_branch
          %1090 = sbr.rel (%p1088) target = $region48
        $region47: #{tpu_custom_call.1} parent=35 // pred_region
          %s1092 = ssub.s32 128, 128
          %1093 = vsyncadd %s1079, %s1092
          %s1094 = sadd.s32 %s32, %s31
          %s1095 = smul.addr %s1094, 128
          %s1096 = scalar_lea.hbm %s4, %s1095
          %s1098 = sshll.u32 %s1082, 4
          %s1099 = int_to_ptr.vmem [resolvable:$true] %s1098
          %1101 = dma.vmem_to_hbm [thread:$0]  %s1099, 128, %s1096, %s1079
        $region48: #{tpu_custom_call.1} parent=35 // pred_fallthru
          _
        // Predicated region
        $region49: #{tpu_custom_call.1} parent=35 // pred_check
          %p1102 = pneg %p181
        $region50: #{tpu_custom_call.1} parent=35 // pred_check_branch
          %1104 = sbr.rel (%p1102) target = $region52
        $region51: #{tpu_custom_call.1} parent=35 // pred_region
          %s1105 = smul.u32 4, %s32
          %s1107 = ssub.s32 512, 512
          %1108 = vsyncadd %s1084, %s1107
          %s1109 = smul.addr %s31, 4
          %s1110 = sadd.s32 %s1105, %s1109
          %s1111 = smul.addr %s1110, 128
          %s1112 = scalar_lea.hbm %s5, %s1111
          %s1113 = sshll.u32 %s1087, 4
          %s1114 = int_to_ptr.vmem [resolvable:$true] %s1113
          %1119 = dma.vmem_to_hbm [thread:$0]  %s1114, 512, %s1112, %s1084, 128, 128, 8
        $region52: #{tpu_custom_call.1} parent=35 // pred_fallthru
          _
      $region36: #{tpu_custom_call.1} parent=5 // pred_fallthru
        _
      %p1120 = scmp.le.s32.totalorder 2, %s22
      // Predicated region
      $region53: #{tpu_custom_call.1} parent=5 // pred_check
        %p1121 = pneg %p1120
      $region54: #{tpu_custom_call.1} parent=5 // pred_check_branch
        %1123 = sbr.rel (%p1121) target = $region56
      $region55: #{tpu_custom_call.1} parent=5 // pred_region
        %s1124 = ssub.s32 %s22, 2
        // Predicated region
        $region57: #{tpu_custom_call.1} parent=55 // pred_check
          %p1125 = pneg %p159
        $region58: #{tpu_custom_call.1} parent=55 // pred_check_branch
          %1127 = sbr.rel (%p1125) target = $region60
        $region59: #{tpu_custom_call.1} parent=55 // pred_region
          %s1128 = sand.u32 %s144, 1
          %s1129 = scalar_lea.sflag [#allocation4], %s1128
          %s1130 = sand.u32 %s144, 1
          %s1131 = smul.addr %s1130, 8
          %s1132 = scalar_lea.vmem [#allocation7], %s1131
          %1133 = dma.done %s1129, 128
        $region60: #{tpu_custom_call.1} parent=55 // pred_fallthru
          _
        // Predicated region
        $region61: #{tpu_custom_call.1} parent=55 // pred_check
          %p1134 = pneg %p187
        $region62: #{tpu_custom_call.1} parent=55 // pred_check_branch
          %1136 = sbr.rel (%p1134) target = $region64
        $region63: #{tpu_custom_call.1} parent=55 // pred_region
          %s1137 = sand.u32 %s172, 1
          %s1138 = scalar_lea.sflag [#allocation9], %s1137
          %s1139 = sand.u32 %s172, 1
          %s1140 = smul.addr %s1139, 32
          %s1141 = scalar_lea.vmem [#allocation8], %s1140
          %1142 = dma.done %s1138, 512
        $region64: #{tpu_custom_call.1} parent=55 // pred_fallthru
          _
      $region56: #{tpu_custom_call.1} parent=5 // pred_fallthru
        _
    $region6: #{tpu_custom_call.1} parent=1 // loop_footer
      %s26 = sadd.s32 1, %s22
    $region7: #{tpu_custom_call.1} parent=1 // loop_footer_branch
      %21 = sbr.rel target = $region3
    $region8: #{tpu_custom_call.1} parent=1 // loop_exit
      _
    %1143 = vsyncpa [#allocation3], 1
    %s1144 = scalar_lea.sflag [#allocation3], 1
    %1145 = vsyncpa %s1144, 1
    %1146 = vsyncpa [#allocation6], 1
    %1147 = vsyncpa [#allocation4], 1
    %s1148 = scalar_lea.sflag [#allocation4], 1
    %1149 = vsyncpa %s1148, 1
    %1150 = vsyncpa [#allocation9], 1
    %s1151 = scalar_lea.sflag [#allocation9], 1
    %1152 = vsyncpa %s1151, 1

</llo_original>
